<compile_context>
chip_gen: v5e
topology: v5e:2x2
jax: 0.10.0
libtpu: 0.0.40
codegen_flags: <defaults>
</compile_context>

<pallas_src>
import functools
import math

import numpy as np
import jax
import jax.numpy as jnp
from jax.experimental import pallas as pl
from jax.experimental.pallas import tpu as pltpu


# ----------------------------------------------------------------------------
# Tiled linear kernel (patch embedding).  x:[M,K](bf16) @ w:[K,N](bf16) + b(f32)
# ----------------------------------------------------------------------------
def _linear_kernel(x_ref, w_ref, b_ref, o_ref, acc_ref, *, nk):
    @pl.when(pl.program_id(1) == 0)
    def _():
        acc_ref[...] = jnp.zeros_like(acc_ref)

    acc_ref[...] += jnp.dot(x_ref[...], w_ref[...],
                            preferred_element_type=jnp.float32)

    @pl.when(pl.program_id(1) == nk - 1)
    def _():
        o_ref[...] = (acc_ref[...] + b_ref[...]).astype(o_ref.dtype)


def _round_up(x, m):
    return ((x + m - 1) // m) * m


def pallas_linear(x, w, b, tm_max=512, tk_max=1024):
    """Tiled over M (parallel) and K (reduction, single step when K<=tk_max)."""
    M, K = x.shape
    Kw, N = w.shape
    assert K == Kw
    tm = M if M <= tm_max else tm_max
    tk = K if K <= tk_max else tk_max
    Mp, Kp = _round_up(M, tm), _round_up(K, tk)
    if (Mp, Kp) != (M, K):
        x = jnp.pad(x, ((0, Mp - M), (0, Kp - K)))
    if Kp != K:
        w = jnp.pad(w, ((0, Kp - K), (0, 0)))
    gm, gk = Mp // tm, Kp // tk
    out = pl.pallas_call(
        functools.partial(_linear_kernel, nk=gk),
        out_shape=jax.ShapeDtypeStruct((Mp, N), jnp.float32),
        grid=(gm, gk),
        in_specs=[
            pl.BlockSpec((tm, tk), lambda i, k: (i, k)),
            pl.BlockSpec((tk, N), lambda i, k: (k, 0)),
            pl.BlockSpec((1, N), lambda i, k: (0, 0)),
        ],
        out_specs=pl.BlockSpec((tm, N), lambda i, k: (i, 0)),
        scratch_shapes=[pltpu.VMEM((tm, N), jnp.float32)],
        compiler_params=pltpu.CompilerParams(
            dimension_semantics=("parallel", "arbitrary")),
    )(x, w, b.reshape(1, -1))
    return out[:M] if Mp != M else out


# ----------------------------------------------------------------------------
# Fused transformer block + decoder head
#   LN1 -> fused QKV -> per-head attention (attn_mean / entropy reduced
#   in-kernel) -> proj + gate + residual -> LN2 -> MLP + residual -> final LN
#   -> decoder linear (cls token skipped in-kernel).
# ----------------------------------------------------------------------------
def _ln(v, g, b, eps=1e-6):
    mu = jnp.mean(v, axis=-1, keepdims=True)
    var = jnp.mean((v - mu) ** 2, axis=-1, keepdims=True)
    return (v - mu) * jax.lax.rsqrt(var + eps) * g + b


def _encoder_decode_kernel(
    x_ref, ln1g, ln1b, wqkv, bqkv, wproj, bproj, gate,
    ln2g, ln2b, fc1w, fc1b, fc2w, fc2b, lnfg, lnfb, dec_w, dec_b,
    lg_ref, am_ref, unc_ref, *, n_heads, use_gate, n_extra,
):
    bf16 = jnp.bfloat16
    x = x_ref[0].astype(jnp.float32)                 # (N, D)
    N, D = x.shape
    dh = D // n_heads
    scale = 1.0 / math.sqrt(dh)

    # ---- attention branch ----
    h = _ln(x, ln1g[...], ln1b[...])
    # Fused QKV: one lane-dense (N,D)x(D,3D) bf16 matmul.
    qkv = jnp.dot(h.astype(bf16), wqkv[...],
                  preferred_element_type=jnp.float32) + bqkv[...]     # (N, 3D)

    wproj_all = wproj[...]                            # (D, D) bf16
    proj_acc = jnp.zeros((N, D), jnp.float32)
    attn_acc = jnp.zeros((1, N), jnp.float32)         # sum over heads & queries
    ent_acc = jnp.zeros((N, 1), jnp.float32)          # entropy per query
    # TODO(synk): for 12-16 heads switch to lax.fori_loop over stacked per-head
    # slices to bound vreg live ranges; static unroll is fine for small heads.
    for hd in range(n_heads):
        q = qkv[:, hd * dh:(hd + 1) * dh].astype(bf16)
        k = qkv[:, D + hd * dh:D + (hd + 1) * dh].astype(bf16)
        v = qkv[:, 2 * D + hd * dh:2 * D + (hd + 1) * dh].astype(bf16)
        s = jax.lax.dot_general(q, k, (((1,), (1,)), ((), ())),
                                preferred_element_type=jnp.float32) * scale
        m = jnp.max(s, axis=-1, keepdims=True)
        s_sh = s - m
        e = jnp.exp(s_sh)
        denom = jnp.sum(e, axis=-1, keepdims=True)
        p = e * pl.reciprocal(denom, approx=True)
        ctx_h = jax.lax.dot_general(p.astype(bf16), v, (((1,), (0,)), ((), ())),
                                    preferred_element_type=jnp.float32)
        proj_acc = proj_acc + jnp.dot(ctx_h.astype(bf16),
                                      wproj_all[hd * dh:(hd + 1) * dh, :],
                                      preferred_element_type=jnp.float32)
        attn_acc = attn_acc + jnp.sum(p, axis=0, keepdims=True)
        # entropy via logsumexp identity: only N logs per head (EUP friendly)
        ent_acc = ent_acc + (jnp.log(denom)
                             - jnp.sum(p * s_sh, axis=-1, keepdims=True))

    attn_out = proj_acc + bproj[...]
    if use_gate:
        attn_out = attn_out * jax.nn.sigmoid(gate[...])
    x = x + attn_out

    # ---- MLP branch ----
    h2 = _ln(x, ln2g[...], ln2b[...])
    h2 = jnp.dot(h2.astype(bf16), fc1w[...],
                 preferred_element_type=jnp.float32) + fc1b[...]
    # TODO(synk): torch.nn.GELU defaults to exact erf; tanh approximation used.
    h2 = jax.nn.gelu(h2, approximate=True)
    h2 = jnp.dot(h2.astype(bf16), fc2w[...],
                 preferred_element_type=jnp.float32) + fc2b[...]
    x = x + h2

    # ---- final LN + decoder linear head (cls token skipped in-kernel) ----
    xf = _ln(x, lnfg[...], lnfb[...])
    xp = xf[n_extra:, :].astype(bf16)                 # (Np, D)
    logits = jnp.dot(xp, dec_w[...],
                     preferred_element_type=jnp.float32) + dec_b[...]
    lg_ref[0] = logits
    am_ref[0] = attn_acc * (1.0 / (n_heads * N))
    unc_ref[0] = jnp.transpose(ent_acc) * (1.0 / n_heads)   # lane-dense (1, N)


def pallas_encoder_decode(x, params, *, n_heads, use_gate, n_extra, n_cls):
    B, N, D = x.shape
    assert D % n_heads == 0
    Np = N - n_extra
    bf16 = jnp.bfloat16
    row = lambda a: a.reshape(1, -1)
    weights = [
        row(params["ln1_g"]), row(params["ln1_b"]),
        params["qkv_w"].astype(bf16), row(params["qkv_b"]),
        params["proj_w"].astype(bf16), row(params["proj_b"]),
        row(params["gate"]),
        row(params["ln2_g"]), row(params["ln2_b"]),
        params["fc1_w"].astype(bf16), row(params["fc1_b"]),
        params["fc2_w"].astype(bf16), row(params["fc2_b"]),
        row(params["lnf_g"]), row(params["lnf_b"]),
        params["dec_w"].astype(bf16), row(params["dec_b"]),
    ]

    def wspec(shape):
        nd = len(shape)
        return pl.BlockSpec(shape, lambda b, _n=nd: (0,) * _n)

    in_specs = [pl.BlockSpec((1, N, D), lambda b: (b, 0, 0))] + [
        wspec(w.shape) for w in weights]
    out_shapes = (
        jax.ShapeDtypeStruct((B, Np, n_cls), jnp.float32),
        jax.ShapeDtypeStruct((B, 1, N), jnp.float32),
        jax.ShapeDtypeStruct((B, 1, N), jnp.float32),
    )
    out_specs = (
        pl.BlockSpec((1, Np, n_cls), lambda b: (b, 0, 0)),
        pl.BlockSpec((1, 1, N), lambda b: (b, 0, 0)),
        pl.BlockSpec((1, 1, N), lambda b: (b, 0, 0)),
    )
    # TODO(synk): for ViT-Base+ on v7x, set vmem_limit_bytes and single-buffer
    # the grid-invariant weight blocks (pipeline_mode=pl.Buffered(1)).
    logits, am, unc = pl.pallas_call(
        functools.partial(_encoder_decode_kernel, n_heads=n_heads,
                          use_gate=use_gate, n_extra=n_extra),
        out_shape=out_shapes,
        grid=(B,),
        in_specs=in_specs,
        out_specs=out_specs,
        compiler_params=pltpu.CompilerParams(
            dimension_semantics=("parallel",)),
    )(x, *weights)
    return logits, am[:, 0, :], unc[:, 0, :]


# ----------------------------------------------------------------------------
# Separable bilinear upsample kernel: (n_cls_tile, nH, nW) -> (n_cls_tile, H, W)
#   height stage: batched (H,nH)@(nH,nW) per class; width stage: one
#   (tile*H, nW)@(nW, W) lane-dense matmul.  Tiled over (batch, class-tile).
# ----------------------------------------------------------------------------
def _upsample_kernel(lg_ref, lh_ref, lwT_ref, o_ref, *, H, W):
    v = lg_ref[0]                                                   # (tc, nH, nW)
    tc, nH, nW = v.shape
    lh_b = jnp.broadcast_to(lh_ref[...][None], (tc, H, nH))
    hm = jax.lax.dot_general(lh_b, v, (((2,), (1,)), ((0,), (0,))),
                             preferred_element_type=jnp.float32)    # (tc, H, nW)
    up = jnp.dot(hm.reshape(tc * H, nW), lwT_ref[...],
                 preferred_element_type=jnp.float32)                # (tc*H, W)
    o_ref[0] = up.reshape(tc, H, W).astype(o_ref.dtype)


def _pick_tile(n, cap):
    t = min(n, cap)
    while n % t:
        t -= 1
    return t


def pallas_upsample(lg, lh, lw, *, H, W, cls_tile_cap=64):
    B, n_cls, nH, nW = lg.shape
    tc = _pick_tile(n_cls, cls_tile_cap)
    nct = n_cls // tc
    return pl.pallas_call(
        functools.partial(_upsample_kernel, H=H, W=W),
        out_shape=jax.ShapeDtypeStruct((B, n_cls, H, W), jnp.float32),
        grid=(B, nct),
        in_specs=[
            pl.BlockSpec((1, tc, nH, nW), lambda b, c: (b, c, 0, 0)),
            pl.BlockSpec((H, nH), lambda b, c: (0, 0)),
            pl.BlockSpec((nW, W), lambda b, c: (0, 0)),
        ],
        out_specs=pl.BlockSpec((1, tc, H, W), lambda b, c: (b, c, 0, 0)),
        compiler_params=pltpu.CompilerParams(
            dimension_semantics=("parallel", "parallel")),
    )(lg, jnp.asarray(lh), jnp.asarray(lw.T))


# ----------------------------------------------------------------------------
# Glue: padding / bilinear interpolation matrices (compile-time constants)
# ----------------------------------------------------------------------------
def padding(im, patch_size):
    B, C, H, W = im.shape
    pad_h = (patch_size - H % patch_size) % patch_size
    pad_w = (patch_size - W % patch_size) % patch_size
    return jnp.pad(im, ((0, 0), (0, 0), (0, pad_h), (0, pad_w)))


def bilinear_matrix(out_size, in_size):
    """Interp matrix matching F.interpolate(mode='bilinear', align_corners=False)."""
    M = np.zeros((out_size, in_size), np.float32)
    if in_size == 1:
        M[:, 0] = 1.0
        return M
    scale = in_size / out_size
    for i in range(out_size):
        src = (i + 0.5) * scale - 0.5
        src = max(src, 0.0)
        x0 = min(int(np.floor(src)), in_size - 1)
        x1 = min(x0 + 1, in_size - 1)
        lam = src - x0
        M[i, x0] += 1.0 - lam
        M[i, x1] += lam
    return M


# ----------------------------------------------------------------------------
# Segmenter forward (repeat_num=None path, distilled=0 => 1 extra token)
# ----------------------------------------------------------------------------
@functools.partial(jax.jit,
                   static_argnames=("patch_size", "n_cls", "n_heads", "use_gate"))
def segmenter_forward(im, params, *, patch_size, n_cls, n_heads, use_gate=True):
    B, C, H_ori, W_ori = im.shape
    im_p = padding(im, patch_size)
    H, W = im_p.shape[2], im_p.shape[3]

    # ---------------- encoder: patch embedding (tiled bf16 matmul) -----------
    nH, nW = H // patch_size, W // patch_size
    patches = im_p.reshape(B, C, nH, patch_size, nW, patch_size)
    patches = patches.transpose(0, 2, 4, 1, 3, 5).reshape(
        B * nH * nW, C * patch_size * patch_size)
    tok = pallas_linear(patches.astype(jnp.bfloat16),
                        params["patch_w"].astype(jnp.bfloat16),
                        params["patch_b"])
    D = tok.shape[-1]
    tok = tok.reshape(B, nH * nW, D)

    cls = jnp.broadcast_to(params["cls_token"], (B, 1, D))
    x = jnp.concatenate([cls, tok], axis=1) + params["pos_embed"]

    # --------- fused transformer block + final LN + decoder linear ----------
    logits, attn_mean, uncertainty = pallas_encoder_decode(
        x, params, n_heads=n_heads, use_gate=use_gate, n_extra=1, n_cls=n_cls)

    # --------- separable bilinear upsample (F.interpolate equivalent) -------
    lg = logits.transpose(0, 2, 1).reshape(B, n_cls, nH, nW)   # tiny XLA shuffle
    lh = bilinear_matrix(H, nH)                                # (H, nH)
    lw = bilinear_matrix(W, nW)                                # (W, nW)
    masks = pallas_upsample(lg, lh, lw, H=H, W=W)              # (B, n_cls, H, W)

    # ---------------- unpadding ----------------
    masks = masks[:, :, :H_ori, :W_ori]
    return masks, attn_mean, uncertainty


# ----------------------------------------------------------------------------
# Deterministic parameter construction + example run
# ----------------------------------------------------------------------------
def make_params(key, *, in_ch, patch_size, d_model, n_heads, mlp_dim, n_cls, n_tokens):
    ks = jax.random.split(key, 12)
    nrm = lambda k, s, sc=0.02: sc * jax.random.normal(k, s, dtype=jnp.float32)
    return {
        "patch_w": nrm(ks[0], (in_ch * patch_size * patch_size, d_model)),
        "patch_b": jnp.zeros((d_model,), jnp.float32),
        "cls_token": nrm(ks[1], (1, 1, d_model)),
        "pos_embed": nrm(ks[2], (1, n_tokens, d_model)),
        "ln1_g": jnp.ones((d_model,), jnp.float32),
        "ln1_b": jnp.zeros((d_model,), jnp.float32),
        "qkv_w": nrm(ks[3], (d_model, 3 * d_model)),
        "qkv_b": jnp.zeros((3 * d_model,), jnp.float32),
        "proj_w": nrm(ks[4], (d_model, d_model)),
        "proj_b": jnp.zeros((d_model,), jnp.float32),
        "gate": nrm(ks[5], (d_model,), 1.0),
        "ln2_g": jnp.ones((d_model,), jnp.float32),
        "ln2_b": jnp.zeros((d_model,), jnp.float32),
        "fc1_w": nrm(ks[6], (d_model, mlp_dim)),
        "fc1_b": jnp.zeros((mlp_dim,), jnp.float32),
        "fc2_w": nrm(ks[7], (mlp_dim, d_model)),
        "fc2_b": jnp.zeros((d_model,), jnp.float32),
        "lnf_g": jnp.ones((d_model,), jnp.float32),
        "lnf_b": jnp.zeros((d_model,), jnp.float32),
        "dec_w": nrm(ks[8], (d_model, n_cls)),
        "dec_b": jnp.zeros((n_cls,), jnp.float32),
    }


if __name__ == "__main__":
    # small shapes: B=2, C=4, H=W=16, patch=8 -> 2x2 patches, D=32, heads=2, n_cls=4
    B, C, H, W = 2, 4, 16, 16
    patch_size, d_model, n_heads, mlp_dim, n_cls = 8, 32, 2, 64, 4
    n_tokens = 1 + (H // patch_size) * (W // patch_size)

    key = jax.random.PRNGKey(0)
    k_im, k_p = jax.random.split(key)
    im = jax.random.normal(k_im, (B, C, H, W), dtype=jnp.float32)
    params = make_params(
        k_p,
        in_ch=C,
        patch_size=patch_size,
        d_model=d_model,
        n_heads=n_heads,
        mlp_dim=mlp_dim,
        n_cls=n_cls,
        n_tokens=n_tokens,
    )

    masks, attn_mean, uncertainty = segmenter_forward(
        im, params, patch_size=patch_size, n_cls=n_cls, n_heads=n_heads, use_gate=True
    )
    jax.block_until_ready((masks, attn_mean, uncertainty))

    assert masks.shape == (B, n_cls, H, W), masks.shape
    assert attn_mean.shape == (B, n_tokens), attn_mean.shape
    assert uncertainty.shape == (B, n_tokens), uncertainty.shape
    assert bool(jnp.all(jnp.isfinite(masks)))
    assert bool(jnp.all(jnp.isfinite(attn_mean)))
    assert bool(jnp.all(jnp.isfinite(uncertainty)))
    print("KERNEL_OK")
</pallas_src>

<mosaic_0001>
module attributes {stable_mosaic.version = 11 : i64} {
  func.func @_linear_kernel(%arg0: i32, %arg1: i32, %arg2: memref<8x256xbf16, #tpu.memory_space<vmem>>, %arg3: memref<256x32xbf16, #tpu.memory_space<vmem>>, %arg4: memref<1x32xf32, #tpu.memory_space<vmem>>, %arg5: memref<8x32xf32, #tpu.memory_space<vmem>>, %arg6: memref<8x32xf32, #tpu.memory_space<vmem>>) attributes {dimension_semantics = [#tpu.dimension_semantics<parallel>, #tpu.dimension_semantics<arbitrary>], iteration_bounds = array<i64: 1, 1>, scalar_prefetch = 0 : i64, scratch_operands = 1 : i64, tpu.core_type = #tpu.core_type<tc>, window_params = [{transform_indices = @transform_0, window_bounds = array<i64: 8, 256>}, {transform_indices = @transform_1, window_bounds = array<i64: 256, 32>}, {pipeline_mode = #tpu.pipeline_mode<synchronous>, transform_indices = @transform_2, window_bounds = array<i64: 1, 32>}, {transform_indices = @transform_3, window_bounds = array<i64: 8, 32>}]} {
    %c0_i32 = arith.constant 0 : i32
    %0 = arith.cmpi eq, %arg1, %c0_i32 : i32
    %1 = arith.extui %0 : i1 to i32
    %c0_i32_0 = arith.constant 0 : i32
    %2 = arith.cmpi ne, %1, %c0_i32_0 : i32
    scf.if %2 {
      %cst_10 = arith.constant 0.000000e+00 : f32
      %12 = vector.broadcast %cst_10 : f32 to vector<8x32xf32>
      %c0_11 = arith.constant 0 : index
      %c0_12 = arith.constant 0 : index
      %13 = vector.load %arg6[%c0_11, %c0_12] : memref<8x32xf32, #tpu.memory_space<vmem>>, vector<8x32xf32>
      tpu.vector_store %arg6[%c0_11, %c0_12], %12 {strides = array<i32>} : memref<8x32xf32, #tpu.memory_space<vmem>>, vector<8x32xf32>,
    } else {
    }
    %c0 = arith.constant 0 : index
    %c0_1 = arith.constant 0 : index
    %3 = vector.load %arg6[%c0, %c0_1] : memref<8x32xf32, #tpu.memory_space<vmem>>, vector<8x32xf32>
    %c0_2 = arith.constant 0 : index
    %c0_3 = arith.constant 0 : index
    %4 = vector.load %arg2[%c0_2, %c0_3] : memref<8x256xbf16, #tpu.memory_space<vmem>>, vector<8x256xbf16>
    %c0_4 = arith.constant 0 : index
    %c0_5 = arith.constant 0 : index
    %5 = vector.load %arg3[%c0_4, %c0_5] : memref<256x32xbf16, #tpu.memory_space<vmem>>, vector<256x32xbf16>
    %cst = arith.constant dense<0.000000e+00> : vector<8x32xf32>
    %6 = tpu.matmul %4, %5, %cst {dimension_numbers = #tpu.dot_dimension_numbers<[1], [0], [0], [1], [0, 0, 1, 1], [], []>} : vector<8x256xbf16>, vector<256x32xbf16>, vector<8x32xf32> -> vector<8x32xf32>
    %7 = arith.addf %3, %6 : vector<8x32xf32>
    %c0_6 = arith.constant 0 : index
    %c0_7 = arith.constant 0 : index
    %8 = vector.load %arg6[%c0_6, %c0_7] : memref<8x32xf32, #tpu.memory_space<vmem>>, vector<8x32xf32>
    tpu.vector_store %arg6[%c0_6, %c0_7], %7 {strides = array<i32>} : memref<8x32xf32, #tpu.memory_space<vmem>>, vector<8x32xf32>,
    %c0_i32_8 = arith.constant 0 : i32
    %9 = arith.cmpi eq, %arg1, %c0_i32_8 : i32
    %10 = arith.extui %9 : i1 to i32
    %c0_i32_9 = arith.constant 0 : i32
    %11 = arith.cmpi ne, %10, %c0_i32_9 : i32
    scf.if %11 {
      %c0_10 = arith.constant 0 : index
      %c0_11 = arith.constant 0 : index
      %12 = vector.load %arg6[%c0_10, %c0_11] : memref<8x32xf32, #tpu.memory_space<vmem>>, vector<8x32xf32>
      %c0_12 = arith.constant 0 : index
      %c0_13 = arith.constant 0 : index
      %13 = vector.load %arg4[%c0_12, %c0_13] : memref<1x32xf32, #tpu.memory_space<vmem>>, vector<1x32xf32>
      %14 = vector.broadcast %13 : vector<1x32xf32> to vector<8x32xf32>
      %15 = arith.addf %12, %14 : vector<8x32xf32>
      %c0_14 = arith.constant 0 : index
      %c0_15 = arith.constant 0 : index
      %16 = vector.load %arg5[%c0_14, %c0_15] : memref<8x32xf32, #tpu.memory_space<vmem>>, vector<8x32xf32>
      tpu.vector_store %arg5[%c0_14, %c0_15], %15 {strides = array<i32>} : memref<8x32xf32, #tpu.memory_space<vmem>>, vector<8x32xf32>,
    } else {
    }
    return
  }
  func.func @transform_0(%arg0: i32, %arg1: i32) -> (i32, i32) {
    %c0_i32 = arith.constant 0 : i32
    return %arg0, %arg1 : i32, i32
  }
  func.func @transform_1(%arg0: i32, %arg1: i32) -> (i32, i32) {
    %c0_i32 = arith.constant 0 : i32
    %c0_i32_0 = arith.constant 0 : i32
    return %arg1, %c0_i32 : i32, i32
  }
  func.func @transform_2(%arg0: i32, %arg1: i32) -> (i32, i32) {
    %c0_i32 = arith.constant 0 : i32
    %c0_i32_0 = arith.constant 0 : i32
    %c0_i32_1 = arith.constant 0 : i32
    return %c0_i32, %c0_i32_0 : i32, i32
  }
  func.func @transform_3(%arg0: i32, %arg1: i32) -> (i32, i32) {
    %c0_i32 = arith.constant 0 : i32
    %c0_i32_0 = arith.constant 0 : i32
    return %arg0, %c0_i32 : i32, i32
  }
}

module attributes {stable_mosaic.version = 11 : i64} {
  func.func @_upsample_kernel(%arg0: i32, %arg1: i32, %arg2: memref<1x4x2x2xf32, #tpu.memory_space<vmem>>, %arg3: memref<16x2xf32, #tpu.memory_space<vmem>>, %arg4: memref<2x16xf32, #tpu.memory_space<vmem>>, %arg5: memref<1x4x16x16xf32, #tpu.memory_space<vmem>>) attributes {dimension_semantics = [#tpu.dimension_semantics<parallel>, #tpu.dimension_semantics<parallel>], iteration_bounds = array<i64: 2, 1>, scalar_prefetch = 0 : i64, scratch_operands = 0 : i64, tpu.core_type = #tpu.core_type<tc>, window_params = [{transform_indices = @transform_0, window_bounds = array<i64: 1, 4, 2, 2>}, {pipeline_mode = #tpu.pipeline_mode<synchronous>, transform_indices = @transform_1, window_bounds = array<i64: 16, 2>}, {pipeline_mode = #tpu.pipeline_mode<synchronous>, transform_indices = @transform_2, window_bounds = array<i64: 2, 16>}, {transform_indices = @transform_3, window_bounds = array<i64: 1, 4, 16, 16>}]} {
    %c0 = arith.constant 0 : index
    %c0_0 = arith.constant 0 : index
    %c0_1 = arith.constant 0 : index
    %c0_2 = arith.constant 0 : index
    %0 = vector.load %arg2[%c0, %c0_0, %c0_1, %c0_2] : memref<1x4x2x2xf32, #tpu.memory_space<vmem>>, vector<1x4x2x2xf32>
    %1 = vector.shape_cast %0 : vector<1x4x2x2xf32> to vector<4x2x2xf32>
    %c0_3 = arith.constant 0 : index
    %c0_4 = arith.constant 0 : index
    %2 = vector.load %arg3[%c0_3, %c0_4] : memref<16x2xf32, #tpu.memory_space<vmem>>, vector<16x2xf32>
    %3 = vector.shape_cast %2 : vector<16x2xf32> to vector<1x16x2xf32>
    %4 = vector.shape_cast %3 : vector<1x16x2xf32> to vector<1x16x2xf32>
    %5 = vector.broadcast %4 : vector<1x16x2xf32> to vector<4x16x2xf32>
    %cst = arith.constant dense<0.000000e+00> : vector<4x16x2xf32>
    %6 = tpu.matmul %5, %1, %cst {dimension_numbers = #tpu.dot_dimension_numbers<[2], [1], [1], [2], [0, 0, 0, 1, 1, 2], [0], [0]>} : vector<4x16x2xf32>, vector<4x2x2xf32>, vector<4x16x2xf32> -> vector<4x16x2xf32>
    %7 = vector.shape_cast %6 : vector<4x16x2xf32> to vector<64x2xf32>
    %c0_5 = arith.constant 0 : index
    %c0_6 = arith.constant 0 : index
    %8 = vector.load %arg4[%c0_5, %c0_6] : memref<2x16xf32, #tpu.memory_space<vmem>>, vector<2x16xf32>
    %cst_7 = arith.constant dense<0.000000e+00> : vector<64x16xf32>
    %9 = tpu.matmul %7, %8, %cst_7 {dimension_numbers = #tpu.dot_dimension_numbers<[1], [0], [0], [1], [0, 0, 1, 1], [], []>} : vector<64x2xf32>, vector<2x16xf32>, vector<64x16xf32> -> vector<64x16xf32>
    %10 = vector.shape_cast %9 : vector<64x16xf32> to vector<4x16x16xf32>
    %c0_8 = arith.constant 0 : index
    %c0_9 = arith.constant 0 : index
    %c0_10 = arith.constant 0 : index
    %c0_11 = arith.constant 0 : index
    %11 = vector.load %arg5[%c0_8, %c0_9, %c0_10, %c0_11] : memref<1x4x16x16xf32, #tpu.memory_space<vmem>>, vector<1x4x16x16xf32>
    %12 = vector.shape_cast %11 : vector<1x4x16x16xf32> to vector<4x16x16xf32>
    %13 = vector.shape_cast %10 : vector<4x16x16xf32> to vector<1x4x16x16xf32>
    tpu.vector_store %arg5[%c0_8, %c0_9, %c0_10, %c0_11], %13 {strides = array<i32>} : memref<1x4x16x16xf32, #tpu.memory_space<vmem>>, vector<1x4x16x16xf32>,
    return
  }
  func.func @transform_0(%arg0: i32, %arg1: i32) -> (i32, i32, i32, i32) {
    %c0_i32 = arith.constant 0 : i32
    %c0_i32_0 = arith.constant 0 : i32
    %c0_i32_1 = arith.constant 0 : i32
    return %arg0, %arg1, %c0_i32, %c0_i32_0 : i32, i32, i32, i32
  }
  func.func @transform_1(%arg0: i32, %arg1: i32) -> (i32, i32) {
    %c0_i32 = arith.constant 0 : i32
    %c0_i32_0 = arith.constant 0 : i32
    %c0_i32_1 = arith.constant 0 : i32
    return %c0_i32, %c0_i32_0 : i32, i32
  }
  func.func @transform_2(%arg0: i32, %arg1: i32) -> (i32, i32) {
    %c0_i32 = arith.constant 0 : i32
    %c0_i32_0 = arith.constant 0 : i32
    %c0_i32_1 = arith.constant 0 : i32
    return %c0_i32, %c0_i32_0 : i32, i32
  }
  func.func @transform_3(%arg0: i32, %arg1: i32) -> (i32, i32, i32, i32) {
    %c0_i32 = arith.constant 0 : i32
    %c0_i32_0 = arith.constant 0 : i32
    %c0_i32_1 = arith.constant 0 : i32
    return %arg0, %arg1, %c0_i32, %c0_i32_0 : i32, i32, i32, i32
  }
}

module attributes {stable_mosaic.version = 11 : i64} {
  func.func @_encoder_decode_kernel(%arg0: i32, %arg1: memref<1x5x32xf32, #tpu.memory_space<vmem>>, %arg2: memref<1x32xf32, #tpu.memory_space<vmem>>, %arg3: memref<1x32xf32, #tpu.memory_space<vmem>>, %arg4: memref<32x96xbf16, #tpu.memory_space<vmem>>, %arg5: memref<1x96xf32, #tpu.memory_space<vmem>>, %arg6: memref<32x32xbf16, #tpu.memory_space<vmem>>, %arg7: memref<1x32xf32, #tpu.memory_space<vmem>>, %arg8: memref<1x32xf32, #tpu.memory_space<vmem>>, %arg9: memref<1x32xf32, #tpu.memory_space<vmem>>, %arg10: memref<1x32xf32, #tpu.memory_space<vmem>>, %arg11: memref<32x64xbf16, #tpu.memory_space<vmem>>, %arg12: memref<1x64xf32, #tpu.memory_space<vmem>>, %arg13: memref<64x32xbf16, #tpu.memory_space<vmem>>, %arg14: memref<1x32xf32, #tpu.memory_space<vmem>>, %arg15: memref<1x32xf32, #tpu.memory_space<vmem>>, %arg16: memref<1x32xf32, #tpu.memory_space<vmem>>, %arg17: memref<32x4xbf16, #tpu.memory_space<vmem>>, %arg18: memref<1x4xf32, #tpu.memory_space<vmem>>, %arg19: memref<1x4x4xf32, #tpu.memory_space<vmem>>, %arg20: memref<1x1x5xf32, #tpu.memory_space<vmem>>, %arg21: memref<1x1x5xf32, #tpu.memory_space<vmem>>) attributes {dimension_semantics = [#tpu.dimension_semantics<parallel>], iteration_bounds = array<i64: 2>, scalar_prefetch = 0 : i64, scratch_operands = 0 : i64, tpu.core_type = #tpu.core_type<tc>, window_params = [{transform_indices = @transform_0, window_bounds = array<i64: 1, 5, 32>}, {pipeline_mode = #tpu.pipeline_mode<synchronous>, transform_indices = @transform_1, window_bounds = array<i64: 1, 32>}, {pipeline_mode = #tpu.pipeline_mode<synchronous>, transform_indices = @transform_2, window_bounds = array<i64: 1, 32>}, {pipeline_mode = #tpu.pipeline_mode<synchronous>, transform_indices = @transform_3, window_bounds = array<i64: 32, 96>}, {pipeline_mode = #tpu.pipeline_mode<synchronous>, transform_indices = @transform_4, window_bounds = array<i64: 1, 96>}, {pipeline_mode = #tpu.pipeline_mode<synchronous>, transform_indices = @transform_5, window_bounds = array<i64: 32, 32>}, {pipeline_mode = #tpu.pipeline_mode<synchronous>, transform_indices = @transform_6, window_bounds = array<i64: 1, 32>}, {pipeline_mode = #tpu.pipeline_mode<synchronous>, transform_indices = @transform_7, window_bounds = array<i64: 1, 32>}, {pipeline_mode = #tpu.pipeline_mode<synchronous>, transform_indices = @transform_8, window_bounds = array<i64: 1, 32>}, {pipeline_mode = #tpu.pipeline_mode<synchronous>, transform_indices = @transform_9, window_bounds = array<i64: 1, 32>}, {pipeline_mode = #tpu.pipeline_mode<synchronous>, transform_indices = @transform_10, window_bounds = array<i64: 32, 64>}, {pipeline_mode = #tpu.pipeline_mode<synchronous>, transform_indices = @transform_11, window_bounds = array<i64: 1, 64>}, {pipeline_mode = #tpu.pipeline_mode<synchronous>, transform_indices = @transform_12, window_bounds = array<i64: 64, 32>}, {pipeline_mode = #tpu.pipeline_mode<synchronous>, transform_indices = @transform_13, window_bounds = array<i64: 1, 32>}, {pipeline_mode = #tpu.pipeline_mode<synchronous>, transform_indices = @transform_14, window_bounds = array<i64: 1, 32>}, {pipeline_mode = #tpu.pipeline_mode<synchronous>, transform_indices = @transform_15, window_bounds = array<i64: 1, 32>}, {pipeline_mode = #tpu.pipeline_mode<synchronous>, transform_indices = @transform_16, window_bounds = array<i64: 32, 4>}, {pipeline_mode = #tpu.pipeline_mode<synchronous>, transform_indices = @transform_17, window_bounds = array<i64: 1, 4>}, {transform_indices = @transform_18, window_bounds = array<i64: 1, 4, 4>}, {transform_indices = @transform_19, window_bounds = array<i64: 1, 1, 5>}, {transform_indices = @transform_20, window_bounds = array<i64: 1, 1, 5>}]} {
    %c0 = arith.constant 0 : index
    %c0_0 = arith.constant 0 : index
    %c0_1 = arith.constant 0 : index
    %0 = vector.load %arg1[%c0, %c0_0, %c0_1] : memref<1x5x32xf32, #tpu.memory_space<vmem>>, vector<1x5x32xf32>
    %1 = vector.shape_cast %0 : vector<1x5x32xf32> to vector<5x32xf32>
    %c0_2 = arith.constant 0 : index
    %c0_3 = arith.constant 0 : index
    %2 = vector.load %arg2[%c0_2, %c0_3] : memref<1x32xf32, #tpu.memory_space<vmem>>, vector<1x32xf32>
    %c0_4 = arith.constant 0 : index
    %c0_5 = arith.constant 0 : index
    %3 = vector.load %arg3[%c0_4, %c0_5] : memref<1x32xf32, #tpu.memory_space<vmem>>, vector<1x32xf32>
    %cst = arith.constant dense<0.000000e+00> : vector<5xf32>
    %4 = vector.multi_reduction <add>, %1, %cst [1] : vector<5x32xf32> to vector<5xf32>
    %5 = vector.shape_cast %4 : vector<5xf32> to vector<5x1xf32>
    %cst_6 = arith.constant 3.200000e+01 : f32
    %6 = vector.broadcast %cst_6 : f32 to vector<5x1xf32>
    %7 = arith.divf %5, %6 : vector<5x1xf32>
    %8 = vector.broadcast %7 : vector<5x1xf32> to vector<5x32xf32>
    %9 = arith.subf %1, %8 : vector<5x32xf32>
    %10 = arith.mulf %9, %9 : vector<5x32xf32>
    %cst_7 = arith.constant dense<0.000000e+00> : vector<5xf32>
    %11 = vector.multi_reduction <add>, %10, %cst_7 [1] : vector<5x32xf32> to vector<5xf32>
    %12 = vector.shape_cast %11 : vector<5xf32> to vector<5x1xf32>
    %cst_8 = arith.constant 3.200000e+01 : f32
    %13 = vector.broadcast %cst_8 : f32 to vector<5x1xf32>
    %14 = arith.divf %12, %13 : vector<5x1xf32>
    %15 = vector.broadcast %7 : vector<5x1xf32> to vector<5x32xf32>
    %16 = arith.subf %1, %15 : vector<5x32xf32>
    %cst_9 = arith.constant 9.99999997E-7 : f32
    %17 = vector.broadcast %cst_9 : f32 to vector<5x1xf32>
    %18 = arith.addf %14, %17 : vector<5x1xf32>
    %19 = math.rsqrt %18 : vector<5x1xf32>
    %20 = vector.broadcast %19 : vector<5x1xf32> to vector<5x32xf32>
    %21 = arith.mulf %16, %20 : vector<5x32xf32>
    %22 = vector.broadcast %2 : vector<1x32xf32> to vector<5x32xf32>
    %23 = arith.mulf %21, %22 : vector<5x32xf32>
    %24 = vector.broadcast %3 : vector<1x32xf32> to vector<5x32xf32>
    %25 = arith.addf %23, %24 : vector<5x32xf32>
    %26 = arith.truncf %25 : vector<5x32xf32> to vector<5x32xbf16>
    %c0_10 = arith.constant 0 : index
    %c0_11 = arith.constant 0 : index
    %27 = vector.load %arg4[%c0_10, %c0_11] : memref<32x96xbf16, #tpu.memory_space<vmem>>, vector<32x96xbf16>
    %cst_12 = arith.constant dense<0.000000e+00> : vector<5x96xf32>
    %28 = tpu.matmul %26, %27, %cst_12 {dimension_numbers = #tpu.dot_dimension_numbers<[1], [0], [0], [1], [0, 0, 1, 1], [], []>} : vector<5x32xbf16>, vector<32x96xbf16>, vector<5x96xf32> -> vector<5x96xf32>
    %c0_13 = arith.constant 0 : index
    %c0_14 = arith.constant 0 : index
    %29 = vector.load %arg5[%c0_13, %c0_14] : memref<1x96xf32, #tpu.memory_space<vmem>>, vector<1x96xf32>
    %30 = vector.broadcast %29 : vector<1x96xf32> to vector<5x96xf32>
    %31 = arith.addf %28, %30 : vector<5x96xf32>
    %c0_15 = arith.constant 0 : index
    %c0_16 = arith.constant 0 : index
    %32 = vector.load %arg6[%c0_15, %c0_16] : memref<32x32xbf16, #tpu.memory_space<vmem>>, vector<32x32xbf16>
    %cst_17 = arith.constant 0.000000e+00 : f32
    %33 = vector.broadcast %cst_17 : f32 to vector<5x32xf32>
    %cst_18 = arith.constant 0.000000e+00 : f32
    %34 = vector.broadcast %cst_18 : f32 to vector<1x5xf32>
    %cst_19 = arith.constant 0.000000e+00 : f32
    %35 = vector.broadcast %cst_19 : f32 to vector<5x1xf32>
    %36 = vector.extract_strided_slice %31 {offsets = [0, 0], sizes = [5, 16], strides = [1, 1]} : vector<5x96xf32> to vector<5x16xf32>
    %37 = arith.truncf %36 : vector<5x16xf32> to vector<5x16xbf16>
    %38 = vector.extract_strided_slice %31 {offsets = [0, 32], sizes = [5, 16], strides = [1, 1]} : vector<5x96xf32> to vector<5x16xf32>
    %39 = arith.truncf %38 : vector<5x16xf32> to vector<5x16xbf16>
    %40 = vector.extract_strided_slice %31 {offsets = [0, 64], sizes = [5, 16], strides = [1, 1]} : vector<5x96xf32> to vector<5x16xf32>
    %41 = arith.truncf %40 : vector<5x16xf32> to vector<5x16xbf16>
    %cst_20 = arith.constant dense<0.000000e+00> : vector<5x5xf32>
    %42 = tpu.matmul %37, %39, %cst_20 {dimension_numbers = #tpu.dot_dimension_numbers<[1], [1], [0], [0], [0, 0, 1, 0], [], []>} : vector<5x16xbf16>, vector<5x16xbf16>, vector<5x5xf32> -> vector<5x5xf32>
    %cst_21 = arith.constant 2.500000e-01 : f32
    %43 = vector.broadcast %cst_21 : f32 to vector<5x5xf32>
    %44 = arith.mulf %42, %43 : vector<5x5xf32>
    %cst_22 = arith.constant dense<0xFF800000> : vector<5xf32>
    %45 = vector.multi_reduction <maximumf>, %44, %cst_22 [1] : vector<5x5xf32> to vector<5xf32>
    %46 = vector.shape_cast %45 : vector<5xf32> to vector<5x1xf32>
    %47 = vector.broadcast %46 : vector<5x1xf32> to vector<5x5xf32>
    %48 = arith.subf %44, %47 : vector<5x5xf32>
    %49 = math.exp %48 : vector<5x5xf32>
    %cst_23 = arith.constant dense<0.000000e+00> : vector<5xf32>
    %50 = vector.multi_reduction <add>, %49, %cst_23 [1] : vector<5x5xf32> to vector<5xf32>
    %51 = vector.shape_cast %50 : vector<5xf32> to vector<5x1xf32>
    %52 = tpu.reciprocal %51 {approx = true} : vector<5x1xf32> -> vector<5x1xf32>
    %53 = vector.broadcast %52 : vector<5x1xf32> to vector<5x5xf32>
    %54 = arith.mulf %49, %53 : vector<5x5xf32>
    %55 = arith.truncf %54 : vector<5x5xf32> to vector<5x5xbf16>
    %cst_24 = arith.constant dense<0.000000e+00> : vector<5x16xf32>
    %56 = tpu.matmul %55, %41, %cst_24 {dimension_numbers = #tpu.dot_dimension_numbers<[1], [0], [0], [1], [0, 0, 1, 1], [], []>} : vector<5x5xbf16>, vector<5x16xbf16>, vector<5x16xf32> -> vector<5x16xf32>
    %57 = arith.truncf %56 : vector<5x16xf32> to vector<5x16xbf16>
    %58 = vector.extract_strided_slice %32 {offsets = [0, 0], sizes = [16, 32], strides = [1, 1]} : vector<32x32xbf16> to vector<16x32xbf16>
    %cst_25 = arith.constant dense<0.000000e+00> : vector<5x32xf32>
    %59 = tpu.matmul %57, %58, %cst_25 {dimension_numbers = #tpu.dot_dimension_numbers<[1], [0], [0], [1], [0, 0, 1, 1], [], []>} : vector<5x16xbf16>, vector<16x32xbf16>, vector<5x32xf32> -> vector<5x32xf32>
    %60 = arith.addf %33, %59 : vector<5x32xf32>
    %cst_26 = arith.constant dense<0.000000e+00> : vector<5xf32>
    %61 = vector.multi_reduction <add>, %54, %cst_26 [0] : vector<5x5xf32> to vector<5xf32>
    %62 = vector.shape_cast %61 : vector<5xf32> to vector<1x5xf32>
    %63 = arith.addf %34, %62 : vector<1x5xf32>
    %64 = math.log %51 : vector<5x1xf32>
    %65 = arith.mulf %54, %48 : vector<5x5xf32>
    %cst_27 = arith.constant dense<0.000000e+00> : vector<5xf32>
    %66 = vector.multi_reduction <add>, %65, %cst_27 [1] : vector<5x5xf32> to vector<5xf32>
    %67 = vector.shape_cast %66 : vector<5xf32> to vector<5x1xf32>
    %68 = arith.subf %64, %67 : vector<5x1xf32>
    %69 = arith.addf %35, %68 : vector<5x1xf32>
    %70 = vector.extract_strided_slice %31 {offsets = [0, 16], sizes = [5, 16], strides = [1, 1]} : vector<5x96xf32> to vector<5x16xf32>
    %71 = arith.truncf %70 : vector<5x16xf32> to vector<5x16xbf16>
    %72 = vector.extract_strided_slice %31 {offsets = [0, 48], sizes = [5, 16], strides = [1, 1]} : vector<5x96xf32> to vector<5x16xf32>
    %73 = arith.truncf %72 : vector<5x16xf32> to vector<5x16xbf16>
    %74 = vector.extract_strided_slice %31 {offsets = [0, 80], sizes = [5, 16], strides = [1, 1]} : vector<5x96xf32> to vector<5x16xf32>
    %75 = arith.truncf %74 : vector<5x16xf32> to vector<5x16xbf16>
    %cst_28 = arith.constant dense<0.000000e+00> : vector<5x5xf32>
    %76 = tpu.matmul %71, %73, %cst_28 {dimension_numbers = #tpu.dot_dimension_numbers<[1], [1], [0], [0], [0, 0, 1, 0], [], []>} : vector<5x16xbf16>, vector<5x16xbf16>, vector<5x5xf32> -> vector<5x5xf32>
    %cst_29 = arith.constant 2.500000e-01 : f32
    %77 = vector.broadcast %cst_29 : f32 to vector<5x5xf32>
    %78 = arith.mulf %76, %77 : vector<5x5xf32>
    %cst_30 = arith.constant dense<0xFF800000> : vector<5xf32>
    %79 = vector.multi_reduction <maximumf>, %78, %cst_30 [1] : vector<5x5xf32> to vector<5xf32>
    %80 = vector.shape_cast %79 : vector<5xf32> to vector<5x1xf32>
    %81 = vector.broadcast %80 : vector<5x1xf32> to vector<5x5xf32>
    %82 = arith.subf %78, %81 : vector<5x5xf32>
    %83 = math.exp %82 : vector<5x5xf32>
    %cst_31 = arith.constant dense<0.000000e+00> : vector<5xf32>
    %84 = vector.multi_reduction <add>, %83, %cst_31 [1] : vector<5x5xf32> to vector<5xf32>
    %85 = vector.shape_cast %84 : vector<5xf32> to vector<5x1xf32>
    %86 = tpu.reciprocal %85 {approx = true} : vector<5x1xf32> -> vector<5x1xf32>
    %87 = vector.broadcast %86 : vector<5x1xf32> to vector<5x5xf32>
    %88 = arith.mulf %83, %87 : vector<5x5xf32>
    %89 = arith.truncf %88 : vector<5x5xf32> to vector<5x5xbf16>
    %cst_32 = arith.constant dense<0.000000e+00> : vector<5x16xf32>
    %90 = tpu.matmul %89, %75, %cst_32 {dimension_numbers = #tpu.dot_dimension_numbers<[1], [0], [0], [1], [0, 0, 1, 1], [], []>} : vector<5x5xbf16>, vector<5x16xbf16>, vector<5x16xf32> -> vector<5x16xf32>
    %91 = arith.truncf %90 : vector<5x16xf32> to vector<5x16xbf16>
    %92 = vector.extract_strided_slice %32 {offsets = [16, 0], sizes = [16, 32], strides = [1, 1]} : vector<32x32xbf16> to vector<16x32xbf16>
    %cst_33 = arith.constant dense<0.000000e+00> : vector<5x32xf32>
    %93 = tpu.matmul %91, %92, %cst_33 {dimension_numbers = #tpu.dot_dimension_numbers<[1], [0], [0], [1], [0, 0, 1, 1], [], []>} : vector<5x16xbf16>, vector<16x32xbf16>, vector<5x32xf32> -> vector<5x32xf32>
    %94 = arith.addf %60, %93 : vector<5x32xf32>
    %cst_34 = arith.constant dense<0.000000e+00> : vector<5xf32>
    %95 = vector.multi_reduction <add>, %88, %cst_34 [0] : vector<5x5xf32> to vector<5xf32>
    %96 = vector.shape_cast %95 : vector<5xf32> to vector<1x5xf32>
    %97 = arith.addf %63, %96 : vector<1x5xf32>
    %98 = math.log %85 : vector<5x1xf32>
    %99 = arith.mulf %88, %82 : vector<5x5xf32>
    %cst_35 = arith.constant dense<0.000000e+00> : vector<5xf32>
    %100 = vector.multi_reduction <add>, %99, %cst_35 [1] : vector<5x5xf32> to vector<5xf32>
    %101 = vector.shape_cast %100 : vector<5xf32> to vector<5x1xf32>
    %102 = arith.subf %98, %101 : vector<5x1xf32>
    %103 = arith.addf %69, %102 : vector<5x1xf32>
    %c0_36 = arith.constant 0 : index
    %c0_37 = arith.constant 0 : index
    %104 = vector.load %arg7[%c0_36, %c0_37] : memref<1x32xf32, #tpu.memory_space<vmem>>, vector<1x32xf32>
    %105 = vector.broadcast %104 : vector<1x32xf32> to vector<5x32xf32>
    %106 = arith.addf %94, %105 : vector<5x32xf32>
    %c0_38 = arith.constant 0 : index
    %c0_39 = arith.constant 0 : index
    %107 = vector.load %arg8[%c0_38, %c0_39] : memref<1x32xf32, #tpu.memory_space<vmem>>, vector<1x32xf32>
    %108 = arith.negf %107 : vector<1x32xf32>
    %109 = math.exp %108 : vector<1x32xf32>
    %cst_40 = arith.constant 1.000000e+00 : f32
    %110 = vector.broadcast %cst_40 : f32 to vector<1x32xf32>
    %111 = arith.addf %110, %109 : vector<1x32xf32>
    %112 = arith.divf %110, %111 : vector<1x32xf32>
    %113 = vector.broadcast %112 : vector<1x32xf32> to vector<5x32xf32>
    %114 = arith.mulf %106, %113 : vector<5x32xf32>
    %115 = arith.addf %1, %114 : vector<5x32xf32>
    %c0_41 = arith.constant 0 : index
    %c0_42 = arith.constant 0 : index
    %116 = vector.load %arg9[%c0_41, %c0_42] : memref<1x32xf32, #tpu.memory_space<vmem>>, vector<1x32xf32>
    %c0_43 = arith.constant 0 : index
    %c0_44 = arith.constant 0 : index
    %117 = vector.load %arg10[%c0_43, %c0_44] : memref<1x32xf32, #tpu.memory_space<vmem>>, vector<1x32xf32>
    %cst_45 = arith.constant dense<0.000000e+00> : vector<5xf32>
    %118 = vector.multi_reduction <add>, %115, %cst_45 [1] : vector<5x32xf32> to vector<5xf32>
    %119 = vector.shape_cast %118 : vector<5xf32> to vector<5x1xf32>
    %cst_46 = arith.constant 3.200000e+01 : f32
    %120 = vector.broadcast %cst_46 : f32 to vector<5x1xf32>
    %121 = arith.divf %119, %120 : vector<5x1xf32>
    %122 = vector.broadcast %121 : vector<5x1xf32> to vector<5x32xf32>
    %123 = arith.subf %115, %122 : vector<5x32xf32>
    %124 = arith.mulf %123, %123 : vector<5x32xf32>
    %cst_47 = arith.constant dense<0.000000e+00> : vector<5xf32>
    %125 = vector.multi_reduction <add>, %124, %cst_47 [1] : vector<5x32xf32> to vector<5xf32>
    %126 = vector.shape_cast %125 : vector<5xf32> to vector<5x1xf32>
    %cst_48 = arith.constant 3.200000e+01 : f32
    %127 = vector.broadcast %cst_48 : f32 to vector<5x1xf32>
    %128 = arith.divf %126, %127 : vector<5x1xf32>
    %129 = vector.broadcast %121 : vector<5x1xf32> to vector<5x32xf32>
    %130 = arith.subf %115, %129 : vector<5x32xf32>
    %cst_49 = arith.constant 9.99999997E-7 : f32
    %131 = vector.broadcast %cst_49 : f32 to vector<5x1xf32>
    %132 = arith.addf %128, %131 : vector<5x1xf32>
    %133 = math.rsqrt %132 : vector<5x1xf32>
    %134 = vector.broadcast %133 : vector<5x1xf32> to vector<5x32xf32>
    %135 = arith.mulf %130, %134 : vector<5x32xf32>
    %136 = vector.broadcast %116 : vector<1x32xf32> to vector<5x32xf32>
    %137 = arith.mulf %135, %136 : vector<5x32xf32>
    %138 = vector.broadcast %117 : vector<1x32xf32> to vector<5x32xf32>
    %139 = arith.addf %137, %138 : vector<5x32xf32>
    %140 = arith.truncf %139 : vector<5x32xf32> to vector<5x32xbf16>
    %c0_50 = arith.constant 0 : index
    %c0_51 = arith.constant 0 : index
    %141 = vector.load %arg11[%c0_50, %c0_51] : memref<32x64xbf16, #tpu.memory_space<vmem>>, vector<32x64xbf16>
    %cst_52 = arith.constant dense<0.000000e+00> : vector<5x64xf32>
    %142 = tpu.matmul %140, %141, %cst_52 {dimension_numbers = #tpu.dot_dimension_numbers<[1], [0], [0], [1], [0, 0, 1, 1], [], []>} : vector<5x32xbf16>, vector<32x64xbf16>, vector<5x64xf32> -> vector<5x64xf32>
    %c0_53 = arith.constant 0 : index
    %c0_54 = arith.constant 0 : index
    %143 = vector.load %arg12[%c0_53, %c0_54] : memref<1x64xf32, #tpu.memory_space<vmem>>, vector<1x64xf32>
    %144 = vector.broadcast %143 : vector<1x64xf32> to vector<5x64xf32>
    %145 = arith.addf %142, %144 : vector<5x64xf32>
    %146 = arith.mulf %145, %145 : vector<5x64xf32>
    %147 = arith.mulf %145, %146 : vector<5x64xf32>
    %cst_55 = arith.constant 4.471500e-02 : f32
    %148 = vector.broadcast %cst_55 : f32 to vector<5x64xf32>
    %149 = arith.mulf %148, %147 : vector<5x64xf32>
    %150 = arith.addf %145, %149 : vector<5x64xf32>
    %cst_56 = arith.constant 0.797884583 : f32
    %151 = vector.broadcast %cst_56 : f32 to vector<5x64xf32>
    %152 = arith.mulf %151, %150 : vector<5x64xf32>
    %153 = math.tanh %152 : vector<5x64xf32>
    %cst_57 = arith.constant 1.000000e+00 : f32
    %154 = vector.broadcast %cst_57 : f32 to vector<5x64xf32>
    %155 = arith.addf %154, %153 : vector<5x64xf32>
    %cst_58 = arith.constant 5.000000e-01 : f32
    %156 = vector.broadcast %cst_58 : f32 to vector<5x64xf32>
    %157 = arith.mulf %156, %155 : vector<5x64xf32>
    %158 = arith.mulf %145, %157 : vector<5x64xf32>
    %159 = arith.truncf %158 : vector<5x64xf32> to vector<5x64xbf16>
    %c0_59 = arith.constant 0 : index
    %c0_60 = arith.constant 0 : index
    %160 = vector.load %arg13[%c0_59, %c0_60] : memref<64x32xbf16, #tpu.memory_space<vmem>>, vector<64x32xbf16>
    %cst_61 = arith.constant dense<0.000000e+00> : vector<5x32xf32>
    %161 = tpu.matmul %159, %160, %cst_61 {dimension_numbers = #tpu.dot_dimension_numbers<[1], [0], [0], [1], [0, 0, 1, 1], [], []>} : vector<5x64xbf16>, vector<64x32xbf16>, vector<5x32xf32> -> vector<5x32xf32>
    %c0_62 = arith.constant 0 : index
    %c0_63 = arith.constant 0 : index
    %162 = vector.load %arg14[%c0_62, %c0_63] : memref<1x32xf32, #tpu.memory_space<vmem>>, vector<1x32xf32>
    %163 = vector.broadcast %162 : vector<1x32xf32> to vector<5x32xf32>
    %164 = arith.addf %161, %163 : vector<5x32xf32>
    %165 = arith.addf %115, %164 : vector<5x32xf32>
    %c0_64 = arith.constant 0 : index
    %c0_65 = arith.constant 0 : index
    %166 = vector.load %arg15[%c0_64, %c0_65] : memref<1x32xf32, #tpu.memory_space<vmem>>, vector<1x32xf32>
    %c0_66 = arith.constant 0 : index
    %c0_67 = arith.constant 0 : index
    %167 = vector.load %arg16[%c0_66, %c0_67] : memref<1x32xf32, #tpu.memory_space<vmem>>, vector<1x32xf32>
    %cst_68 = arith.constant dense<0.000000e+00> : vector<5xf32>
    %168 = vector.multi_reduction <add>, %165, %cst_68 [1] : vector<5x32xf32> to vector<5xf32>
    %169 = vector.shape_cast %168 : vector<5xf32> to vector<5x1xf32>
    %cst_69 = arith.constant 3.200000e+01 : f32
    %170 = vector.broadcast %cst_69 : f32 to vector<5x1xf32>
    %171 = arith.divf %169, %170 : vector<5x1xf32>
    %172 = vector.broadcast %171 : vector<5x1xf32> to vector<5x32xf32>
    %173 = arith.subf %165, %172 : vector<5x32xf32>
    %174 = arith.mulf %173, %173 : vector<5x32xf32>
    %cst_70 = arith.constant dense<0.000000e+00> : vector<5xf32>
    %175 = vector.multi_reduction <add>, %174, %cst_70 [1] : vector<5x32xf32> to vector<5xf32>
    %176 = vector.shape_cast %175 : vector<5xf32> to vector<5x1xf32>
    %cst_71 = arith.constant 3.200000e+01 : f32
    %177 = vector.broadcast %cst_71 : f32 to vector<5x1xf32>
    %178 = arith.divf %176, %177 : vector<5x1xf32>
    %179 = vector.broadcast %171 : vector<5x1xf32> to vector<5x32xf32>
    %180 = arith.subf %165, %179 : vector<5x32xf32>
    %cst_72 = arith.constant 9.99999997E-7 : f32
    %181 = vector.broadcast %cst_72 : f32 to vector<5x1xf32>
    %182 = arith.addf %178, %181 : vector<5x1xf32>
    %183 = math.rsqrt %182 : vector<5x1xf32>
    %184 = vector.broadcast %183 : vector<5x1xf32> to vector<5x32xf32>
    %185 = arith.mulf %180, %184 : vector<5x32xf32>
    %186 = vector.broadcast %166 : vector<1x32xf32> to vector<5x32xf32>
    %187 = arith.mulf %185, %186 : vector<5x32xf32>
    %188 = vector.broadcast %167 : vector<1x32xf32> to vector<5x32xf32>
    %189 = arith.addf %187, %188 : vector<5x32xf32>
    %190 = vector.extract_strided_slice %189 {offsets = [1, 0], sizes = [4, 32], strides = [1, 1]} : vector<5x32xf32> to vector<4x32xf32>
    %191 = arith.truncf %190 : vector<4x32xf32> to vector<4x32xbf16>
    %c0_73 = arith.constant 0 : index
    %c0_74 = arith.constant 0 : index
    %192 = vector.load %arg17[%c0_73, %c0_74] : memref<32x4xbf16, #tpu.memory_space<vmem>>, vector<32x4xbf16>
    %cst_75 = arith.constant dense<0.000000e+00> : vector<4x4xf32>
    %193 = tpu.matmul %191, %192, %cst_75 {dimension_numbers = #tpu.dot_dimension_numbers<[1], [0], [0], [1], [0, 0, 1, 1], [], []>} : vector<4x32xbf16>, vector<32x4xbf16>, vector<4x4xf32> -> vector<4x4xf32>
    %c0_76 = arith.constant 0 : index
    %c0_77 = arith.constant 0 : index
    %194 = vector.load %arg18[%c0_76, %c0_77] : memref<1x4xf32, #tpu.memory_space<vmem>>, vector<1x4xf32>
    %195 = vector.broadcast %194 : vector<1x4xf32> to vector<4x4xf32>
    %196 = arith.addf %193, %195 : vector<4x4xf32>
    %c0_78 = arith.constant 0 : index
    %c0_79 = arith.constant 0 : index
    %c0_80 = arith.constant 0 : index
    %197 = vector.load %arg19[%c0_78, %c0_79, %c0_80] : memref<1x4x4xf32, #tpu.memory_space<vmem>>, vector<1x4x4xf32>
    %198 = vector.shape_cast %197 : vector<1x4x4xf32> to vector<4x4xf32>
    %199 = vector.shape_cast %196 : vector<4x4xf32> to vector<1x4x4xf32>
    tpu.vector_store %arg19[%c0_78, %c0_79, %c0_80], %199 {strides = array<i32>} : memref<1x4x4xf32, #tpu.memory_space<vmem>>, vector<1x4x4xf32>,
    %cst_81 = arith.constant 1.000000e-01 : f32
    %200 = vector.broadcast %cst_81 : f32 to vector<1x5xf32>
    %201 = arith.mulf %97, %200 : vector<1x5xf32>
    %c0_82 = arith.constant 0 : index
    %c0_83 = arith.constant 0 : index
    %c0_84 = arith.constant 0 : index
    %202 = vector.load %arg20[%c0_82, %c0_83, %c0_84] : memref<1x1x5xf32, #tpu.memory_space<vmem>>, vector<1x1x5xf32>
    %203 = vector.shape_cast %202 : vector<1x1x5xf32> to vector<1x5xf32>
    %204 = vector.shape_cast %201 : vector<1x5xf32> to vector<1x1x5xf32>
    tpu.vector_store %arg20[%c0_82, %c0_83, %c0_84], %204 {strides = array<i32>} : memref<1x1x5xf32, #tpu.memory_space<vmem>>, vector<1x1x5xf32>,
    %205 = tpu.transpose %103, [1, 0] : vector<5x1xf32> -> vector<1x5xf32>
    %cst_85 = arith.constant 5.000000e-01 : f32
    %206 = vector.broadcast %cst_85 : f32 to vector<1x5xf32>
    %207 = arith.mulf %205, %206 : vector<1x5xf32>
    %c0_86 = arith.constant 0 : index
    %c0_87 = arith.constant 0 : index
    %c0_88 = arith.constant 0 : index
    %208 = vector.load %arg21[%c0_86, %c0_87, %c0_88] : memref<1x1x5xf32, #tpu.memory_space<vmem>>, vector<1x1x5xf32>
    %209 = vector.shape_cast %208 : vector<1x1x5xf32> to vector<1x5xf32>
    %210 = vector.shape_cast %207 : vector<1x5xf32> to vector<1x1x5xf32>
    tpu.vector_store %arg21[%c0_86, %c0_87, %c0_88], %210 {strides = array<i32>} : memref<1x1x5xf32, #tpu.memory_space<vmem>>, vector<1x1x5xf32>,
    return
  }
  func.func @transform_0(%arg0: i32) -> (i32, i32, i32) {
    %c0_i32 = arith.constant 0 : i32
    %c0_i32_0 = arith.constant 0 : i32
    %c0_i32_1 = arith.constant 0 : i32
    return %arg0, %c0_i32, %c0_i32_0 : i32, i32, i32
  }
  func.func @transform_1(%arg0: i32) -> (i32, i32) {
    %c0_i32 = arith.constant 0 : i32
    %c0_i32_0 = arith.constant 0 : i32
    %c0_i32_1 = arith.constant 0 : i32
    return %c0_i32, %c0_i32_0 : i32, i32
  }
  func.func @transform_2(%arg0: i32) -> (i32, i32) {
    %c0_i32 = arith.constant 0 : i32
    %c0_i32_0 = arith.constant 0 : i32
    %c0_i32_1 = arith.constant 0 : i32
    return %c0_i32, %c0_i32_0 : i32, i32
  }
  func.func @transform_3(%arg0: i32) -> (i32, i32) {
    %c0_i32 = arith.constant 0 : i32
    %c0_i32_0 = arith.constant 0 : i32
    %c0_i32_1 = arith.constant 0 : i32
    return %c0_i32, %c0_i32_0 : i32, i32
  }
  func.func @transform_4(%arg0: i32) -> (i32, i32) {
    %c0_i32 = arith.constant 0 : i32
    %c0_i32_0 = arith.constant 0 : i32
    %c0_i32_1 = arith.constant 0 : i32
    return %c0_i32, %c0_i32_0 : i32, i32
  }
  func.func @transform_5(%arg0: i32) -> (i32, i32) {
    %c0_i32 = arith.constant 0 : i32
    %c0_i32_0 = arith.constant 0 : i32
    %c0_i32_1 = arith.constant 0 : i32
    return %c0_i32, %c0_i32_0 : i32, i32
  }
  func.func @transform_6(%arg0: i32) -> (i32, i32) {
    %c0_i32 = arith.constant 0 : i32
    %c0_i32_0 = arith.constant 0 : i32
    %c0_i32_1 = arith.constant 0 : i32
    return %c0_i32, %c0_i32_0 : i32, i32
  }
  func.func @transform_7(%arg0: i32) -> (i32, i32) {
    %c0_i32 = arith.constant 0 : i32
    %c0_i32_0 = arith.constant 0 : i32
    %c0_i32_1 = arith.constant 0 : i32
    return %c0_i32, %c0_i32_0 : i32, i32
  }
  func.func @transform_8(%arg0: i32) -> (i32, i32) {
    %c0_i32 = arith.constant 0 : i32
    %c0_i32_0 = arith.constant 0 : i32
    %c0_i32_1 = arith.constant 0 : i32
    return %c0_i32, %c0_i32_0 : i32, i32
  }
  func.func @transform_9(%arg0: i32) -> (i32, i32) {
    %c0_i32 = arith.constant 0 : i32
    %c0_i32_0 = arith.constant 0 : i32
    %c0_i32_1 = arith.constant 0 : i32
    return %c0_i32, %c0_i32_0 : i32, i32
  }
  func.func @transform_10(%arg0: i32) -> (i32, i32) {
    %c0_i32 = arith.constant 0 : i32
    %c0_i32_0 = arith.constant 0 : i32
    %c0_i32_1 = arith.constant 0 : i32
    return %c0_i32, %c0_i32_0 : i32, i32
  }
  func.func @transform_11(%arg0: i32) -> (i32, i32) {
    %c0_i32 = arith.constant 0 : i32
    %c0_i32_0 = arith.constant 0 : i32
    %c0_i32_1 = arith.constant 0 : i32
    return %c0_i32, %c0_i32_0 : i32, i32
  }
  func.func @transform_12(%arg0: i32) -> (i32, i32) {
    %c0_i32 = arith.constant 0 : i32
    %c0_i32_0 = arith.constant 0 : i32
    %c0_i32_1 = arith.constant 0 : i32
    return %c0_i32, %c0_i32_0 : i32, i32
  }
  func.func @transform_13(%arg0: i32) -> (i32, i32) {
    %c0_i32 = arith.constant 0 : i32
    %c0_i32_0 = arith.constant 0 : i32
    %c0_i32_1 = arith.constant 0 : i32
    return %c0_i32, %c0_i32_0 : i32, i32
  }
  func.func @transform_14(%arg0: i32) -> (i32, i32) {
    %c0_i32 = arith.constant 0 : i32
    %c0_i32_0 = arith.constant 0 : i32
    %c0_i32_1 = arith.constant 0 : i32
    return %c0_i32, %c0_i32_0 : i32, i32
  }
  func.func @transform_15(%arg0: i32) -> (i32, i32) {
    %c0_i32 = arith.constant 0 : i32
    %c0_i32_0 = arith.constant 0 : i32
    %c0_i32_1 = arith.constant 0 : i32
    return %c0_i32, %c0_i32_0 : i32, i32
  }
  func.func @transform_16(%arg0: i32) -> (i32, i32) {
    %c0_i32 = arith.constant 0 : i32
    %c0_i32_0 = arith.constant 0 : i32
    %c0_i32_1 = arith.constant 0 : i32
    return %c0_i32, %c0_i32_0 : i32, i32
  }
  func.func @transform_17(%arg0: i32) -> (i32, i32) {
    %c0_i32 = arith.constant 0 : i32
    %c0_i32_0 = arith.constant 0 : i32
    %c0_i32_1 = arith.constant 0 : i32
    return %c0_i32, %c0_i32_0 : i32, i32
  }
  func.func @transform_18(%arg0: i32) -> (i32, i32, i32) {
    %c0_i32 = arith.constant 0 : i32
    %c0_i32_0 = arith.constant 0 : i32
    %c0_i32_1 = arith.constant 0 : i32
    return %arg0, %c0_i32, %c0_i32_0 : i32, i32, i32
  }
  func.func @transform_19(%arg0: i32) -> (i32, i32, i32) {
    %c0_i32 = arith.constant 0 : i32
    %c0_i32_0 = arith.constant 0 : i32
    %c0_i32_1 = arith.constant 0 : i32
    return %arg0, %c0_i32, %c0_i32_0 : i32, i32, i32
  }
  func.func @transform_20(%arg0: i32) -> (i32, i32, i32) {
    %c0_i32 = arith.constant 0 : i32
    %c0_i32_0 = arith.constant 0 : i32
    %c0_i32_1 = arith.constant 0 : i32
    return %arg0, %c0_i32, %c0_i32_0 : i32, i32, i32
  }
}

</mosaic_0001>

<llo_original>
// kernel: segmenter_forward.5
$region0: #{segmenter_forward.5}
  #allocation0 [shape = 'u32[]', space=smem, size = 0x4, offset = 0x4, fixed_abs, tag = 'smem constant byte address 0x4 - core index']
  #allocation1 [shape = 'u32[72,128]{1,0:T(1,128)}', space=vmem, size = 0x9000, scoped, tag = 'internal scratch']
  %s0 = inlined_call_operand.vmem [shape: f32[2,4,2,2], index: 0, kind: input, shape index: {}]
  %s1 = inlined_call_operand.vmem [shape: f32[16,2], index: 1, kind: input, shape index: {}]
  %s2 = inlined_call_operand.vmem [shape: f32[2,16], index: 2, kind: input, shape index: {}]
  %s3 = inlined_call_operand.hbm [shape: f32[2,4,16,16], index: 3, kind: output, shape index: {}]
  %s4 = sld [smem:[#allocation0]]
  $region45: #{segmenter_forward.5} parent=0
    _
  %s6 = ssub.s32 1, %s4
  %s7 = scalar_select 0, %s6, %s4
  $region1: #{segmenter_forward.5} parent=0
    #allocation2 [shape = 'u8[65536]{0}', space=vmem, size = 0x10000, scoped, tag = 'output window, operand 0']
    #allocation3 [shape = 's32[2]{0}', space=sflag, size = 0x8, scoped, tag = 'scoped memory for segmenter_forward.5']
    %8 = vsyncpa [#allocation3], 0
    %s9 = scalar_lea.sflag [#allocation3], 1
    %10 = vsyncpa %s9, 0
    loop: start=0, step=1, limit=4
    $region2: #{segmenter_forward.5} parent=1 // loop_pre_header
      _
    $region3: #{segmenter_forward.5} parent=1 // loop_header
      %s12 = sphi 0, %s16
      %p13 = scmp.ge.s32.totalorder %s12, 4
      %s19 = sphi 0, %s31
      %s20 = sphi 0, %s27
      %s21 = sphi 0, %s19
      %s22 = sphi 0, %s20
      %s23 = sphi 0, %s21
      %s24 = sphi 0, %s22
      %s36 = sphi 0, %s38
      %s39 = sphi 0, %s36
      %s40 = sphi 0, %s39
      %s56 = sphi 0, %s40
      %s60 = sphi 0, %s60
      %s62 = sphi 0, %s60
      %s63 = sphi 0, %s62
      %s77 = sphi 0, %s63
      %s81 = sphi 0, %s81
      %s83 = sphi 0, %s81
      %s84 = sphi 0, %s83
      %s98 = sphi 0, %s84
      %s106 = sphi 0, %s108
      %s109 = sphi 0, %s106
      %s110 = sphi 0, %s109
      %s126 = sphi 0, %s110
    $region4: #{segmenter_forward.5} parent=1 // loop_header_branch
      %15 = sbr.rel (%p13) target = $region8
    $region5: #{segmenter_forward.5} parent=1 // loop_body
      %s17 = ssub.s32 %s12, 1
      %s18 = ssub.s32 %s12, 2
      %s25 = sadd.s32 1, %s20
      %p26 = scmp.ge.s32.totalorder %s25, 1
      %s27 = scalar_select %p26, 0, %s25
      %s28 = sadd.s32 1, %s19
      %s29 = scalar_select %p26, %s28, %s19
      %p30 = scmp.ge.s32.totalorder %s29, 2
      %s31 = scalar_select %p30, 0, %s29
      %s32 = ssub.s32 %s19, %s31
      %s33 = ssub.s32 %s20, %s27
      %s34 = sor.u32 %s32, %s33
      %p35 = scmp.eq.s32.totalorder %s34, 0
      %s37 = sadd.s32 %s36, 1
      %s38 = scalar_select %p35, %s36, %s37
      %p41 = pneg %p35
      %p42 = scmp.eq.s32.totalorder %s12, 1
      %p43 = por %p41, %p42
      %p44 = scmp.ne.s32.totalorder %s36, %s39
      %p45 = scmp.eq.s32.totalorder %s12, 0
      %p46 = por %p44, %p45
      %p47 = scmp.ne.s32.totalorder %s36, %s39
      %p48 = scmp.eq.s32.totalorder %s17, 1
      %p49 = por %p47, %p48
      %p50 = scmp.ne.s32.totalorder %s39, %s40
      %p51 = scmp.eq.s32.totalorder %s17, 0
      %p52 = por %p50, %p51
      %p53 = scmp.ne.s32.totalorder %s39, %s40
      %p54 = scmp.eq.s32.totalorder %s18, 1
      %p55 = por %p53, %p54
      %p57 = scmp.ne.s32.totalorder %s40, %s56
      %p58 = scmp.eq.s32.totalorder %s18, 0
      %p59 = por %p57, %p58
      %s61 = sadd.s32 %s60, 1
      %p64 = scmp.eq.s32.totalorder %s12, 1
      %p65 = scmp.ne.s32.totalorder %s60, %s62
      %p66 = scmp.eq.s32.totalorder %s12, 0
      %p67 = por %p65, %p66
      %p68 = scmp.ne.s32.totalorder %s60, %s62
      %p69 = scmp.eq.s32.totalorder %s17, 1
      %p70 = por %p68, %p69
      %p71 = scmp.ne.s32.totalorder %s62, %s63
      %p72 = scmp.eq.s32.totalorder %s17, 0
      %p73 = por %p71, %p72
      %p74 = scmp.ne.s32.totalorder %s62, %s63
      %p75 = scmp.eq.s32.totalorder %s18, 1
      %p76 = por %p74, %p75
      %p78 = scmp.ne.s32.totalorder %s63, %s77
      %p79 = scmp.eq.s32.totalorder %s18, 0
      %p80 = por %p78, %p79
      %s82 = sadd.s32 %s81, 1
      %p85 = scmp.eq.s32.totalorder %s12, 1
      %p86 = scmp.ne.s32.totalorder %s81, %s83
      %p87 = scmp.eq.s32.totalorder %s12, 0
      %p88 = por %p86, %p87
      %p89 = scmp.ne.s32.totalorder %s81, %s83
      %p90 = scmp.eq.s32.totalorder %s17, 1
      %p91 = por %p89, %p90
      %p92 = scmp.ne.s32.totalorder %s83, %s84
      %p93 = scmp.eq.s32.totalorder %s17, 0
      %p94 = por %p92, %p93
      %p95 = scmp.ne.s32.totalorder %s83, %s84
      %p96 = scmp.eq.s32.totalorder %s18, 1
      %p97 = por %p95, %p96
      %p99 = scmp.ne.s32.totalorder %s84, %s98
      %p100 = scmp.eq.s32.totalorder %s18, 0
      %p101 = por %p99, %p100
      %s102 = ssub.s32 %s19, %s31
      %s103 = ssub.s32 %s20, %s27
      %s104 = sor.u32 %s102, %s103
      %p105 = scmp.eq.s32.totalorder %s104, 0
      %s107 = sadd.s32 %s106, 1
      %s108 = scalar_select %p105, %s106, %s107
      %p111 = pneg %p105
      %p112 = scmp.eq.s32.totalorder %s12, 1
      %p113 = por %p111, %p112
      %p114 = scmp.ne.s32.totalorder %s106, %s109
      %p115 = scmp.eq.s32.totalorder %s12, 0
      %p116 = por %p114, %p115
      %p117 = scmp.ne.s32.totalorder %s106, %s109
      %p118 = scmp.eq.s32.totalorder %s17, 1
      %p119 = por %p117, %p118
      %p120 = scmp.ne.s32.totalorder %s109, %s110
      %p121 = scmp.eq.s32.totalorder %s17, 0
      %p122 = por %p120, %p121
      %p123 = scmp.ne.s32.totalorder %s109, %s110
      %p124 = scmp.eq.s32.totalorder %s18, 1
      %p125 = por %p123, %p124
      %p127 = scmp.ne.s32.totalorder %s110, %s126
      %p128 = scmp.eq.s32.totalorder %s18, 0
      %p129 = por %p127, %p128
      %p130 = scmp.le.s32.totalorder 1, %s12
      %p131 = scmp.lt.s32.totalorder %s12, 3
      %p132 = pnand %p130, %p131
      %p133 = pneg %p132
      // Predicated region
      $region9: #{segmenter_forward.5} parent=5 // pred_check
        _
      $region10: #{segmenter_forward.5} parent=5 // pred_check_branch
        %135 = sbr.rel (%p132) target = $region12
      $region11: #{segmenter_forward.5} parent=5 // pred_region
        %s136 = ssub.s32 %s12, 1
        // Predicated region
        $region13: #{segmenter_forward.5} parent=11 // pred_check
          %p137 = pneg %p73
        $region14: #{segmenter_forward.5} parent=11 // pred_check_branch
          %139 = sbr.rel (%p137) target = $region16
        $region15: #{segmenter_forward.5} parent=11 // pred_region
          _
        $region16: #{segmenter_forward.5} parent=11 // pred_fallthru
          _
        // Predicated region
        $region17: #{segmenter_forward.5} parent=11 // pred_check
          %p140 = pneg %p94
        $region18: #{segmenter_forward.5} parent=11 // pred_check_branch
          %142 = sbr.rel (%p140) target = $region20
        $region19: #{segmenter_forward.5} parent=11 // pred_region
          _
        $region20: #{segmenter_forward.5} parent=11 // pred_fallthru
          _
      $region12: #{segmenter_forward.5} parent=5 // pred_fallthru
        _
      %p143 = scmp.lt.s32.totalorder %s12, 2
      // Predicated region
      $region21: #{segmenter_forward.5} parent=5 // pred_check
        %p144 = pneg %p143
      $region22: #{segmenter_forward.5} parent=5 // pred_check_branch
        %146 = sbr.rel (%p144) target = $region24
      $region23: #{segmenter_forward.5} parent=5 // pred_region
        // Predicated region
        $region25: #{segmenter_forward.5} parent=23 // pred_check
          %p147 = pneg %p46
        $region26: #{segmenter_forward.5} parent=23 // pred_check_branch
          %149 = sbr.rel (%p147) target = $region28
        $region27: #{segmenter_forward.5} parent=23 // pred_region
          %s150 = smul.u32 4, %s20
          %p151 = scmp.lt.s32.totalorder %s19, 1
          %s152 = scalar_select %p151, %s19, 1
          %p153 = scmp.lt.s32.totalorder %s150, 3
          %s154 = scalar_select %p153, %s150, 3
          %s155 = smul.addr %s152, 4
          %s156 = sadd.s32 %s154, %s155
          %s157 = smul.addr %s156, 2
          %s158 = scalar_lea.vmem %s0, %s157
          %s159 = smul.u32 4, %s20
        $region28: #{segmenter_forward.5} parent=23 // pred_fallthru
          _
      $region24: #{segmenter_forward.5} parent=5 // pred_fallthru
        _
      %p160 = scmp.le.s32.totalorder 1, %s12
      %p161 = scmp.lt.s32.totalorder %s12, 3
      %p162 = pnand %p160, %p161
      %p163 = pneg %p162
      // Predicated region
      $region29: #{segmenter_forward.5} parent=5 // pred_check
        _
      $region30: #{segmenter_forward.5} parent=5 // pred_check_branch
        %165 = sbr.rel (%p162) target = $region32
      $region31: #{segmenter_forward.5} parent=5 // pred_region
        %s166 = ssub.s32 %s12, 1
        %s167 = smul.u32 4, %s22
        %p168 = scmp.lt.s32.totalorder %s21, 1
        %s169 = scalar_select %p168, %s21, 1
        %p170 = scmp.lt.s32.totalorder %s167, 3
        %s171 = scalar_select %p170, %s167, 3
        %s172 = smul.addr %s169, 4
        %s173 = sadd.s32 %s171, %s172
        %s174 = smul.addr %s173, 2
        %s175 = scalar_lea.vmem %s0, %s174
        %p176 = pneg %p52
        %p177 = pneg %p49
        %p178 = pneg %p73
        %p179 = pneg %p70
        %p180 = pneg %p94
        %p181 = pneg %p91
        %p182 = pneg %p122
        %p183 = pneg %p119
        %s184 = sand.u32 %s109, 1
        %s185 = scalar_lea.sflag [#allocation3], %s184
        %s186 = sand.u32 %s109, 1
        %s187 = smul.addr %s186, 64
        %s188 = scalar_lea.vmem [#allocation2], %s187
        %s189 = smul.u32 4, %s22
        %p190 = scmp.lt.s32.totalorder %s21, 1
        %s191 = scalar_select %p190, %s21, 1
        %p192 = scmp.lt.s32.totalorder %s189, 3
        %s193 = scalar_select %p192, %s189, 3
        %s194 = smul.addr %s191, 4
        %s195 = sadd.s32 %s193, %s194
        %s196 = smul.addr %s195, 2
        %s197 = scalar_lea.vmem %s0, %s196
        %s198 = smul.u32 4, %s22
        %s199 = smul.u32 4, %s22
        %v200 = vld [vmem:[%s197] sm:$0x3]
        %v201 = vld [vmem:[%s197 + $0x2] sm:$0x3]
        %v202 = vld [vmem:[%s197 + $0x4] sm:$0x3]
        %v203 = vld [vmem:[%s197 + $0x6] sm:$0x3]
        %v204 = vld [vmem:[%s1] sm:$0xff]
        %v205 = vld [vmem:[%s1 + $0x8] sm:$0xff]
        %vm206 = vcmask 15360
        %v208 = vsel %vm206, %v204, 0
        %v211 = vsel %vm206, %v205, 0
        %vm213 = vcmask 1041408
        %v215 = vsel %vm213, %v200, 0
        %217 = vmatpush.msra.mxu0 0.0
        %218 = vmatpush.msra.mxu0 0.0
        %219 = vmatpush.msra.mxu0 0.0
        %220 = vmatpush.msra.mxu0 0.0
        %221 = vmatpush.msra.mxu0 0.0
        %222 = vmatpush.msra.mxu0 0.0
        %223 = vmatpush.msra.mxu0 0.0
        %224 = vmatpush.msra.mxu0 0.0
        %225 = vmatpush.msra.mxu0 0.0
        %226 = vmatpush.msra.mxu0 0.0
        %227 = vmatpush.msra.mxu0 0.0
        %228 = vmatpush.msra.mxu0 0.0
        %229 = vmatpush.msra.mxu0 0.0
        %230 = vmatpush.msra.mxu0 0.0
        %231 = vmatpush.msra.mxu0 0.0
        %232 = vmatpush.msra.mxu0 %v215
        %233 = vmatmul.f32.gmra.mxu0 %v208
        %v234 = vpop.f32.mrf.mxu0
        %v235 = vadd.f32 0.0, %v234
        %236 = vmatmul.f32.gmra.mxu0 %v211
        %v237 = vpop.f32.mrf.mxu0
        %v238 = vadd.f32 0.0, %v237
        %239 = vdwg.mxu0
        %v241 = vsel %vm213, %v201, 0
        %243 = vmatpush.msra.mxu0 0.0
        %244 = vmatpush.msra.mxu0 0.0
        %245 = vmatpush.msra.mxu0 0.0
        %246 = vmatpush.msra.mxu0 0.0
        %247 = vmatpush.msra.mxu0 0.0
        %248 = vmatpush.msra.mxu0 0.0
        %249 = vmatpush.msra.mxu0 0.0
        %250 = vmatpush.msra.mxu0 0.0
        %251 = vmatpush.msra.mxu0 0.0
        %252 = vmatpush.msra.mxu0 0.0
        %253 = vmatpush.msra.mxu0 0.0
        %254 = vmatpush.msra.mxu0 0.0
        %255 = vmatpush.msra.mxu0 0.0
        %256 = vmatpush.msra.mxu0 0.0
        %257 = vmatpush.msra.mxu0 0.0
        %258 = vmatpush.msra.mxu0 %v241
        %259 = vmatmul.f32.gmra.mxu0 %v208
        %v260 = vpop.f32.mrf.mxu0
        %v261 = vadd.f32 0.0, %v260
        %262 = vmatmul.f32.gmra.mxu0 %v211
        %v263 = vpop.f32.mrf.mxu0
        %v264 = vadd.f32 0.0, %v263
        %265 = vdwg.mxu0
        %v267 = vsel %vm213, %v202, 0
        %269 = vmatpush.msra.mxu0 0.0
        %270 = vmatpush.msra.mxu0 0.0
        %271 = vmatpush.msra.mxu0 0.0
        %272 = vmatpush.msra.mxu0 0.0
        %273 = vmatpush.msra.mxu0 0.0
        %274 = vmatpush.msra.mxu0 0.0
        %275 = vmatpush.msra.mxu0 0.0
        %276 = vmatpush.msra.mxu0 0.0
        %277 = vmatpush.msra.mxu0 0.0
        %278 = vmatpush.msra.mxu0 0.0
        %279 = vmatpush.msra.mxu0 0.0
        %280 = vmatpush.msra.mxu0 0.0
        %281 = vmatpush.msra.mxu0 0.0
        %282 = vmatpush.msra.mxu0 0.0
        %283 = vmatpush.msra.mxu0 0.0
        %284 = vmatpush.msra.mxu0 %v267
        %285 = vmatmul.f32.gmra.mxu0 %v208
        %v286 = vpop.f32.mrf.mxu0
        %v287 = vadd.f32 0.0, %v286
        %288 = vmatmul.f32.gmra.mxu0 %v211
        %v289 = vpop.f32.mrf.mxu0
        %v290 = vadd.f32 0.0, %v289
        %291 = vdwg.mxu0
        %v293 = vsel %vm213, %v203, 0
        %295 = vmatpush.msra.mxu0 0.0
        %296 = vmatpush.msra.mxu0 0.0
        %297 = vmatpush.msra.mxu0 0.0
        %298 = vmatpush.msra.mxu0 0.0
        %299 = vmatpush.msra.mxu0 0.0
        %300 = vmatpush.msra.mxu0 0.0
        %301 = vmatpush.msra.mxu0 0.0
        %302 = vmatpush.msra.mxu0 0.0
        %303 = vmatpush.msra.mxu0 0.0
        %304 = vmatpush.msra.mxu0 0.0
        %305 = vmatpush.msra.mxu0 0.0
        %306 = vmatpush.msra.mxu0 0.0
        %307 = vmatpush.msra.mxu0 0.0
        %308 = vmatpush.msra.mxu0 0.0
        %309 = vmatpush.msra.mxu0 0.0
        %310 = vmatpush.msra.mxu0 %v293
        %311 = vmatmul.f32.gmra.mxu0 %v208
        %v312 = vpop.f32.mrf.mxu0
        %v313 = vadd.f32 0.0, %v312
        %314 = vmatmul.f32.gmra.mxu0 %v211
        %v315 = vpop.f32.mrf.mxu0
        %v316 = vadd.f32 0.0, %v315
        %317 = vdwg.mxu0
        %v318 = vld [vmem:[%s2] sm:$0x3]
        %v320 = vsel %vm206, %v235, 0
        %v323 = vsel %vm206, %v238, 0
        %v326 = vsel %vm206, %v261, 0
        %v329 = vsel %vm206, %v264, 0
        %v332 = vsel %vm206, %v287, 0
        %v335 = vsel %vm206, %v290, 0
        %v338 = vsel %vm206, %v313, 0
        %v341 = vsel %vm206, %v316, 0
        %v344 = vsel %vm213, %v318, 0
        %346 = vmatpush.msra.mxu0 0.0
        %347 = vmatpush.msra.mxu0 0.0
        %348 = vmatpush.msra.mxu0 0.0
        %349 = vmatpush.msra.mxu0 0.0
        %350 = vmatpush.msra.mxu0 0.0
        %351 = vmatpush.msra.mxu0 0.0
        %352 = vmatpush.msra.mxu0 0.0
        %353 = vmatpush.msra.mxu0 0.0
        %354 = vmatpush.msra.mxu0 0.0
        %355 = vmatpush.msra.mxu0 0.0
        %356 = vmatpush.msra.mxu0 0.0
        %357 = vmatpush.msra.mxu0 0.0
        %358 = vmatpush.msra.mxu0 0.0
        %359 = vmatpush.msra.mxu0 0.0
        %360 = vmatpush.msra.mxu0 0.0
        %361 = vmatpush.msra.mxu0 %v344
        %362 = vmatmul.f32.gmra.mxu0 %v320
        %v363 = vpop.f32.mrf.mxu0
        %v364 = vadd.f32 0.0, %v363
        %365 = vmatmul.f32.gmra.mxu0 %v323
        %v366 = vpop.f32.mrf.mxu0
        %v367 = vadd.f32 0.0, %v366
        %368 = vmatmul.f32.gmra.mxu0 %v326
        %v369 = vpop.f32.mrf.mxu0
        %v370 = vadd.f32 0.0, %v369
        %371 = vmatmul.f32.gmra.mxu0 %v329
        %v372 = vpop.f32.mrf.mxu0
        %v373 = vadd.f32 0.0, %v372
        %374 = vmatmul.f32.gmra.mxu0 %v332
        %v375 = vpop.f32.mrf.mxu0
        %v376 = vadd.f32 0.0, %v375
        %377 = vmatmul.f32.gmra.mxu0 %v335
        %v378 = vpop.f32.mrf.mxu0
        %v379 = vadd.f32 0.0, %v378
        %380 = vmatmul.f32.gmra.mxu0 %v338
        %v381 = vpop.f32.mrf.mxu0
        %v382 = vadd.f32 0.0, %v381
        %383 = vmatmul.f32.gmra.mxu0 %v341
        %v384 = vpop.f32.mrf.mxu0
        %v385 = vadd.f32 0.0, %v384
        %386 = vdwg.mxu0
        %vm387 = vcmask 130048
        %388 = vst.msk [vmem:[%s188] sm:$0xff] %vm387, %v364
        %389 = vst.msk [vmem:[%s188 + $0x8] sm:$0xff] %vm387, %v367
        %390 = vst.msk [vmem:[%s188 + $0x10] sm:$0xff] %vm387, %v370
        %391 = vst.msk [vmem:[%s188 + $0x18] sm:$0xff] %vm387, %v373
        %392 = vst.msk [vmem:[%s188 + $0x20] sm:$0xff] %vm387, %v376
        %393 = vst.msk [vmem:[%s188 + $0x28] sm:$0xff] %vm387, %v379
        %394 = vst.msk [vmem:[%s188 + $0x30] sm:$0xff] %vm387, %v382
        %395 = vst.msk [vmem:[%s188 + $0x38] sm:$0xff] %vm387, %v385
        %s396 = sand.u32 %s109, 1
        %s397 = scalar_lea.sflag [#allocation3], %s396
        %s398 = sand.u32 %s109, 1
        %s399 = smul.addr %s398, 64
        %s400 = scalar_lea.vmem [#allocation2], %s399
        // Predicated region
        $region33: #{segmenter_forward.5} parent=31 // pred_check
          %p401 = pneg %p119
        $region34: #{segmenter_forward.5} parent=31 // pred_check_branch
          %403 = sbr.rel (%p401) target = $region36
        $region35: #{segmenter_forward.5} parent=31 // pred_region
          %s404 = smul.u32 4, %s22
          %406 = vsyncadd %s397, 0
          %s407 = smul.addr %s404, 2
          %s408 = smul.addr %s21, 8
          %s409 = sadd.s32 %s407, %s408
          %s410 = smul.addr %s409, 8
          %s411 = scalar_lea.hbm %s3, %s410
          %s412 = sshll.u32 %s400, 4
          %s413 = int_to_ptr.vmem [resolvable:$true] %s412
          %s414 = sshll.u32 %s411, 4
          %s415 = int_to_ptr.hbm [resolvable:$true] %s414
          %420 = dma.vmem_to_hbm [thread:$0]  %s413, 1024, %s415, %s397, 128, 128, 8
        $region36: #{segmenter_forward.5} parent=31 // pred_fallthru
          _
      $region32: #{segmenter_forward.5} parent=5 // pred_fallthru
        _
      %p421 = scmp.le.s32.totalorder 2, %s12
      // Predicated region
      $region37: #{segmenter_forward.5} parent=5 // pred_check
        %p422 = pneg %p421
      $region38: #{segmenter_forward.5} parent=5 // pred_check_branch
        %424 = sbr.rel (%p422) target = $region40
      $region39: #{segmenter_forward.5} parent=5 // pred_region
        %s425 = ssub.s32 %s12, 2
        // Predicated region
        $region41: #{segmenter_forward.5} parent=39 // pred_check
          %p426 = pneg %p125
        $region42: #{segmenter_forward.5} parent=39 // pred_check_branch
          %428 = sbr.rel (%p426) target = $region44
        $region43: #{segmenter_forward.5} parent=39 // pred_region
          %s429 = sand.u32 %s110, 1
          %s430 = scalar_lea.sflag [#allocation3], %s429
          %s431 = sand.u32 %s110, 1
          %s432 = smul.addr %s431, 64
          %s433 = scalar_lea.vmem [#allocation2], %s432
          %435 = dma.done %s430, 1024
        $region44: #{segmenter_forward.5} parent=39 // pred_fallthru
          _
      $region40: #{segmenter_forward.5} parent=5 // pred_fallthru
        _
    $region6: #{segmenter_forward.5} parent=1 // loop_footer
      %s16 = sadd.s32 1, %s12
    $region7: #{segmenter_forward.5} parent=1 // loop_footer_branch
      %11 = sbr.rel target = $region3
    $region8: #{segmenter_forward.5} parent=1 // loop_exit
      _
    %436 = vsyncpa [#allocation3], 1
    %s437 = scalar_lea.sflag [#allocation3], 1
    %438 = vsyncpa %s437, 1

// kernel: segmenter_forward.3
$region0: #{segmenter_forward.3}
  #allocation0 [shape = 'u32[]', space=smem, size = 0x4, offset = 0x4, fixed_abs, tag = 'smem constant byte address 0x4 - core index']
  #allocation1 [shape = 'u32[72,128]{1,0:T(1,128)}', space=vmem, size = 0x9000, scoped, tag = 'internal scratch']
  #allocation2 [shape = 'f32[8,32]{1,0:T(8,128)}', space=vmem, size = 0x1000, scoped, tag = 'scratch operand']
  %s0 = inlined_call_operand.vmem [shape: bf16[8,256], index: 0, kind: input, shape index: {}]
  %s1 = inlined_call_operand.vmem [shape: bf16[256,32], index: 1, kind: input, shape index: {}]
  %s2 = inlined_call_operand.vmem [shape: f32[1,32], index: 2, kind: input, shape index: {}]
  %s3 = inlined_call_operand.vmem [shape: f32[8,32], index: 3, kind: output, shape index: {}]
  %s4 = sld [smem:[#allocation0]]
  $region30: #{segmenter_forward.3} parent=0
    _
  %s6 = ssub.s32 1, %s4
  %s7 = scalar_select 0, %s6, %s4
  // Predicated region
  $region2: #{segmenter_forward.3} parent=0 // pred_check
    _
  $region3: #{segmenter_forward.3} parent=0 // pred_check_branch
    %9 = sbr.rel (0) target = $region5
  $region4: #{segmenter_forward.3} parent=0 // pred_region
    _
  $region5: #{segmenter_forward.3} parent=0 // pred_fallthru
    _
  // Predicated region
  $region6: #{segmenter_forward.3} parent=0 // pred_check
    _
  $region7: #{segmenter_forward.3} parent=0 // pred_check_branch
    %11 = sbr.rel (0) target = $region9
  $region8: #{segmenter_forward.3} parent=0 // pred_region
    _
  $region9: #{segmenter_forward.3} parent=0 // pred_fallthru
    _
  // Predicated region
  $region10: #{segmenter_forward.3} parent=0 // pred_check
    _
  $region11: #{segmenter_forward.3} parent=0 // pred_check_branch
    %13 = sbr.rel (0) target = $region13
  $region12: #{segmenter_forward.3} parent=0 // pred_region
    _
  $region13: #{segmenter_forward.3} parent=0 // pred_fallthru
    _
  %p14 = scmp.eq.s32.totalorder 0, 0
  // Predicated region
  $region14: #{segmenter_forward.3} parent=0 // pred_check
    %p15 = pneg %p14
  $region15: #{segmenter_forward.3} parent=0 // pred_check_branch
    %17 = sbr.rel (%p15) target = $region17
  $region16: #{segmenter_forward.3} parent=0 // pred_region
    %vm18 = vcmask 261120
    %19 = vst.msk [vmem:[#allocation2] sm:$0xff] %vm18, 0.0
  $region17: #{segmenter_forward.3} parent=0 // pred_fallthru
    _
  %v20 = vld [vmem:[#allocation2] sm:$0xff]
  %v21 = vld [vmem:[%s0] sm:$0xff]
  %v22 = vld [vmem:[%s1] sm:$0xf]
  %v23 = vld [vmem:[%s1 + $0x4] sm:$0xf]
  %v24 = vld [vmem:[%s1 + $0x8] sm:$0xf]
  %v25 = vld [vmem:[%s1 + $0xc] sm:$0xf]
  %v26 = vld [vmem:[%s1 + $0x10] sm:$0xf]
  %v27 = vld [vmem:[%s1 + $0x14] sm:$0xf]
  %v28 = vld [vmem:[%s1 + $0x18] sm:$0xf]
  %v29 = vld [vmem:[%s1 + $0x1c] sm:$0xf]
  %v30 = vld [vmem:[%s1 + $0x20] sm:$0xf]
  %v31 = vld [vmem:[%s1 + $0x24] sm:$0xf]
  %v32 = vld [vmem:[%s1 + $0x28] sm:$0xf]
  %v33 = vld [vmem:[%s1 + $0x2c] sm:$0xf]
  %v34 = vld [vmem:[%s1 + $0x30] sm:$0xf]
  %v35 = vld [vmem:[%s1 + $0x34] sm:$0xf]
  %v36 = vld [vmem:[%s1 + $0x38] sm:$0xf]
  %v37 = vld [vmem:[%s1 + $0x3c] sm:$0xf]
  %v38 = vld [vmem:[%s1 + $0x40] sm:$0xf]
  %v39 = vld [vmem:[%s1 + $0x44] sm:$0xf]
  %v40 = vld [vmem:[%s1 + $0x48] sm:$0xf]
  %v41 = vld [vmem:[%s1 + $0x4c] sm:$0xf]
  %v42 = vld [vmem:[%s1 + $0x50] sm:$0xf]
  %v43 = vld [vmem:[%s1 + $0x54] sm:$0xf]
  %v44 = vld [vmem:[%s1 + $0x58] sm:$0xf]
  %v45 = vld [vmem:[%s1 + $0x5c] sm:$0xf]
  %v46 = vld [vmem:[%s1 + $0x60] sm:$0xf]
  %v47 = vld [vmem:[%s1 + $0x64] sm:$0xf]
  %v48 = vld [vmem:[%s1 + $0x68] sm:$0xf]
  %v49 = vld [vmem:[%s1 + $0x6c] sm:$0xf]
  %v50 = vld [vmem:[%s1 + $0x70] sm:$0xf]
  %v51 = vld [vmem:[%s1 + $0x74] sm:$0xf]
  %v52 = vld [vmem:[%s1 + $0x78] sm:$0xf]
  %v53 = vld [vmem:[%s1 + $0x7c] sm:$0xf]
  %v55 = vunpack.c.l.b16 %v21
  %v56 = vunpack.c.h.b16 %v21
  %v57 = vpack.c.b16 %v55, %v55
  %v58 = vpack.c.b16 %v56, %v56
  %v93 = vunpack.c.l.b16 %v22
  %v94 = vunpack.c.l.b16 %v23
  %v95 = vunpack.c.l.b16 %v24
  %v96 = vunpack.c.l.b16 %v25
  %v97 = vunpack.c.l.b16 %v26
  %v98 = vunpack.c.l.b16 %v27
  %v99 = vunpack.c.l.b16 %v28
  %v100 = vunpack.c.l.b16 %v29
  %v101 = vunpack.c.l.b16 %v30
  %v102 = vunpack.c.l.b16 %v31
  %v103 = vunpack.c.l.b16 %v32
  %v104 = vunpack.c.l.b16 %v33
  %v105 = vunpack.c.l.b16 %v34
  %v106 = vunpack.c.l.b16 %v35
  %v107 = vunpack.c.l.b16 %v36
  %v108 = vunpack.c.l.b16 %v37
  %v109 = vunpack.c.l.b16 %v38
  %v110 = vunpack.c.l.b16 %v39
  %v111 = vunpack.c.l.b16 %v40
  %v112 = vunpack.c.l.b16 %v41
  %v113 = vunpack.c.l.b16 %v42
  %v114 = vunpack.c.l.b16 %v43
  %v115 = vunpack.c.l.b16 %v44
  %v116 = vunpack.c.l.b16 %v45
  %v117 = vunpack.c.l.b16 %v46
  %v118 = vunpack.c.l.b16 %v47
  %v119 = vunpack.c.l.b16 %v48
  %v120 = vunpack.c.l.b16 %v49
  %v121 = vunpack.c.l.b16 %v50
  %v122 = vunpack.c.l.b16 %v51
  %v123 = vunpack.c.l.b16 %v52
  %v124 = vunpack.c.l.b16 %v53
  %v125 = vpack.c.b16 %v94, %v93
  %v126 = vpack.c.b16 %v96, %v95
  %v127 = vpack.c.b16 %v98, %v97
  %v128 = vpack.c.b16 %v100, %v99
  %v129 = vpack.c.b16 %v102, %v101
  %v130 = vpack.c.b16 %v104, %v103
  %v131 = vpack.c.b16 %v106, %v105
  %v132 = vpack.c.b16 %v108, %v107
  %v133 = vpack.c.b16 %v110, %v109
  %v134 = vpack.c.b16 %v112, %v111
  %v135 = vpack.c.b16 %v114, %v113
  %v136 = vpack.c.b16 %v116, %v115
  %v137 = vpack.c.b16 %v118, %v117
  %v138 = vpack.c.b16 %v120, %v119
  %v139 = vpack.c.b16 %v122, %v121
  %v140 = vpack.c.b16 %v124, %v123
  %157 = vmatpush.bf16.msra.mxu0 %v132
  %158 = vmatpush.bf16.msra.mxu0 %v131
  %159 = vmatpush.bf16.msra.mxu0 %v130
  %160 = vmatpush.bf16.msra.mxu0 %v129
  %161 = vmatpush.bf16.msra.mxu0 %v128
  %162 = vmatpush.bf16.msra.mxu0 %v127
  %163 = vmatpush.bf16.msra.mxu0 %v126
  %164 = vmatpush.bf16.msra.mxu0 %v125
  %165 = vmatmul.bf16.gmra.mxu0 %v57
  %v166 = vpop.f32.mrf.mxu0
  %v167 = vadd.f32 0.0, %v166
  %v168 = vpop.f32.mrf.mxu0
  %169 = vdwg.mxu0
  %170 = vmatpush.bf16.msra.mxu0 %v140
  %171 = vmatpush.bf16.msra.mxu0 %v139
  %172 = vmatpush.bf16.msra.mxu0 %v138
  %173 = vmatpush.bf16.msra.mxu0 %v137
  %174 = vmatpush.bf16.msra.mxu0 %v136
  %175 = vmatpush.bf16.msra.mxu0 %v135
  %176 = vmatpush.bf16.msra.mxu0 %v134
  %177 = vmatpush.bf16.msra.mxu0 %v133
  %178 = vmatmul.bf16.gmra.mxu0 %v58
  %v179 = vpop.f32.mrf.mxu0
  %v180 = vadd.f32 %v167, %v179
  %v181 = vpop.f32.mrf.mxu0
  %182 = vdwg.mxu0
  %v183 = vadd.f32 %v20, %v180
  %vm184 = vcmask 261120
  %185 = vst.msk [vmem:[#allocation2] sm:$0xff] %vm184, %v183
  // Predicated region
  $region18: #{segmenter_forward.3} parent=0 // pred_check
    %p186 = pneg %p14
  $region19: #{segmenter_forward.3} parent=0 // pred_check_branch
    %188 = sbr.rel (%p186) target = $region21
  $region20: #{segmenter_forward.3} parent=0 // pred_region
    %v189 = vld [vmem:[#allocation2] sm:$0xff]
    %v190 = vld [vmem:[%s2] sm:$0x1]
    %v192 = vperm.slane %v190, 0
    %v194 = vadd.f32 %v189, %v192
    %195 = vst.msk [vmem:[%s3] sm:$0xff] %vm184, %v194
  $region21: #{segmenter_forward.3} parent=0 // pred_fallthru
    _
  // Predicated region
  $region22: #{segmenter_forward.3} parent=0 // pred_check
    _
  $region23: #{segmenter_forward.3} parent=0 // pred_check_branch
    %197 = sbr.rel (0) target = $region25
  $region24: #{segmenter_forward.3} parent=0 // pred_region
    _
  $region25: #{segmenter_forward.3} parent=0 // pred_fallthru
    _
  // Predicated region
  $region26: #{segmenter_forward.3} parent=0 // pred_check
    _
  $region27: #{segmenter_forward.3} parent=0 // pred_check_branch
    %199 = sbr.rel (0) target = $region29
  $region28: #{segmenter_forward.3} parent=0 // pred_region
    _
  $region29: #{segmenter_forward.3} parent=0 // pred_fallthru
    _

// kernel: segmenter_forward.4
$region0: #{segmenter_forward.4}
  #allocation0 [shape = 'u32[]', space=smem, size = 0x4, offset = 0x4, fixed_abs, tag = 'smem constant byte address 0x4 - core index']
  #allocation1 [shape = 'u32[72,128]{1,0:T(1,128)}', space=vmem, size = 0x9000, scoped, tag = 'internal scratch']
  %s0 = inlined_call_operand.vmem [shape: f32[2,5,32], index: 0, kind: input, shape index: {}]
  %s1 = inlined_call_operand.vmem [shape: f32[1,32], index: 1, kind: input, shape index: {}]
  %s2 = inlined_call_operand.vmem [shape: f32[1,32], index: 2, kind: input, shape index: {}]
  %s3 = inlined_call_operand.vmem [shape: bf16[32,96], index: 3, kind: input, shape index: {}]
  %s4 = inlined_call_operand.vmem [shape: f32[1,96], index: 4, kind: input, shape index: {}]
  %s5 = inlined_call_operand.vmem [shape: bf16[32,32], index: 5, kind: input, shape index: {}]
  %s6 = inlined_call_operand.vmem [shape: f32[1,32], index: 6, kind: input, shape index: {}]
  %s7 = inlined_call_operand.vmem [shape: f32[1,32], index: 7, kind: input, shape index: {}]
  %s8 = inlined_call_operand.vmem [shape: f32[1,32], index: 8, kind: input, shape index: {}]
  %s9 = inlined_call_operand.vmem [shape: f32[1,32], index: 9, kind: input, shape index: {}]
  %s10 = inlined_call_operand.vmem [shape: bf16[32,64], index: 10, kind: input, shape index: {}]
  %s11 = inlined_call_operand.vmem [shape: f32[1,64], index: 11, kind: input, shape index: {}]
  %s12 = inlined_call_operand.vmem [shape: bf16[64,32], index: 12, kind: input, shape index: {}]
  %s13 = inlined_call_operand.vmem [shape: f32[1,32], index: 13, kind: input, shape index: {}]
  %s14 = inlined_call_operand.vmem [shape: f32[1,32], index: 14, kind: input, shape index: {}]
  %s15 = inlined_call_operand.vmem [shape: f32[1,32], index: 15, kind: input, shape index: {}]
  %s16 = inlined_call_operand.vmem [shape: bf16[32,4], index: 16, kind: input, shape index: {}]
  %s17 = inlined_call_operand.vmem [shape: f32[1,4], index: 17, kind: input, shape index: {}]
  %s18 = inlined_call_operand.vmem [shape: f32[2,4,4], index: 18, kind: output, shape index: {0}]
  %s19 = inlined_call_operand.hbm [shape: f32[2,1,5], index: 19, kind: output, shape index: {1}]
  %s20 = inlined_call_operand.hbm [shape: f32[2,1,5], index: 20, kind: output, shape index: {2}]
  %21 = xla_tuple %s18, %s19, %s20
  %s22 = sld [smem:[#allocation0]]
  $region121: #{segmenter_forward.4} parent=0
    _
  %s24 = ssub.s32 1, %s22
  %s25 = scalar_select 0, %s24, %s22
  $region1: #{segmenter_forward.4} parent=0
    #allocation2 [shape = 'u8[1024]{0}', space=vmem, size = 0x400, scoped, tag = 'output window, operand 1']
    #allocation3 [shape = 's32[2]{0}', space=sflag, size = 0x8, scoped, tag = 'scoped memory for segmenter_forward.4']
    #allocation4 [shape = 'u8[1024]{0}', space=vmem, size = 0x400, scoped, tag = 'output window, operand 2']
    #allocation5 [shape = 's32[2]{0}', space=sflag, size = 0x8, scoped, tag = 'scoped memory for segmenter_forward.4']
    %26 = vsyncpa [#allocation3], 0
    %s27 = scalar_lea.sflag [#allocation3], 1
    %28 = vsyncpa %s27, 0
    %29 = vsyncpa [#allocation5], 0
    %s30 = scalar_lea.sflag [#allocation5], 1
    %31 = vsyncpa %s30, 0
    loop: start=0, step=1, limit=4
    $region2: #{segmenter_forward.4} parent=1 // loop_pre_header
      _
    $region3: #{segmenter_forward.4} parent=1 // loop_header
      %s33 = sphi 0, %s37
      %p34 = scmp.ge.s32.totalorder %s33, 4
      %s43 = sphi 0, %s45
      %s46 = sphi 0, %s43
      %s47 = sphi 0, %s46
      %s63 = sphi 0, %s47
      %s67 = sphi 0, %s67
      %s69 = sphi 0, %s67
      %s70 = sphi 0, %s69
      %s84 = sphi 0, %s70
      %s88 = sphi 0, %s88
      %s90 = sphi 0, %s88
      %s91 = sphi 0, %s90
      %s105 = sphi 0, %s91
      %s109 = sphi 0, %s109
      %s111 = sphi 0, %s109
      %s112 = sphi 0, %s111
      %s126 = sphi 0, %s112
      %s130 = sphi 0, %s130
      %s132 = sphi 0, %s130
      %s133 = sphi 0, %s132
      %s147 = sphi 0, %s133
      %s151 = sphi 0, %s151
      %s153 = sphi 0, %s151
      %s154 = sphi 0, %s153
      %s168 = sphi 0, %s154
      %s172 = sphi 0, %s172
      %s174 = sphi 0, %s172
      %s175 = sphi 0, %s174
      %s189 = sphi 0, %s175
      %s193 = sphi 0, %s193
      %s195 = sphi 0, %s193
      %s196 = sphi 0, %s195
      %s210 = sphi 0, %s196
      %s214 = sphi 0, %s214
      %s216 = sphi 0, %s214
      %s217 = sphi 0, %s216
      %s231 = sphi 0, %s217
      %s235 = sphi 0, %s235
      %s237 = sphi 0, %s235
      %s238 = sphi 0, %s237
      %s252 = sphi 0, %s238
      %s256 = sphi 0, %s256
      %s258 = sphi 0, %s256
      %s259 = sphi 0, %s258
      %s273 = sphi 0, %s259
      %s277 = sphi 0, %s277
      %s279 = sphi 0, %s277
      %s280 = sphi 0, %s279
      %s294 = sphi 0, %s280
      %s298 = sphi 0, %s298
      %s300 = sphi 0, %s298
      %s301 = sphi 0, %s300
      %s315 = sphi 0, %s301
      %s319 = sphi 0, %s319
      %s321 = sphi 0, %s319
      %s322 = sphi 0, %s321
      %s336 = sphi 0, %s322
      %s340 = sphi 0, %s340
      %s342 = sphi 0, %s340
      %s343 = sphi 0, %s342
      %s357 = sphi 0, %s343
      %s361 = sphi 0, %s361
      %s363 = sphi 0, %s361
      %s364 = sphi 0, %s363
      %s378 = sphi 0, %s364
      %s382 = sphi 0, %s382
      %s384 = sphi 0, %s382
      %s385 = sphi 0, %s384
      %s399 = sphi 0, %s385
      %s403 = sphi 0, %s403
      %s405 = sphi 0, %s403
      %s406 = sphi 0, %s405
      %s420 = sphi 0, %s406
      %s426 = sphi 0, %s428
      %s429 = sphi 0, %s426
      %s430 = sphi 0, %s429
      %s446 = sphi 0, %s430
      %s452 = sphi 0, %s454
      %s455 = sphi 0, %s452
      %s456 = sphi 0, %s455
      %s472 = sphi 0, %s456
      %s478 = sphi 0, %s480
      %s481 = sphi 0, %s478
      %s482 = sphi 0, %s481
      %s498 = sphi 0, %s482
    $region4: #{segmenter_forward.4} parent=1 // loop_header_branch
      %36 = sbr.rel (%p34) target = $region8
    $region5: #{segmenter_forward.4} parent=1 // loop_body
      %s38 = ssub.s32 %s33, 1
      %s39 = ssub.s32 %s33, 2
      %s40 = sadd.s32 %s33, 1
      %s41 = ssub.s32 %s33, %s40
      %p42 = scmp.eq.s32.totalorder %s41, 0
      %s44 = sadd.s32 %s43, 1
      %s45 = scalar_select %p42, %s43, %s44
      %p48 = pneg %p42
      %p49 = scmp.eq.s32.totalorder %s33, 1
      %p50 = por %p48, %p49
      %p51 = scmp.ne.s32.totalorder %s43, %s46
      %p52 = scmp.eq.s32.totalorder %s33, 0
      %p53 = por %p51, %p52
      %p54 = scmp.ne.s32.totalorder %s43, %s46
      %p55 = scmp.eq.s32.totalorder %s38, 1
      %p56 = por %p54, %p55
      %p57 = scmp.ne.s32.totalorder %s46, %s47
      %p58 = scmp.eq.s32.totalorder %s38, 0
      %p59 = por %p57, %p58
      %p60 = scmp.ne.s32.totalorder %s46, %s47
      %p61 = scmp.eq.s32.totalorder %s39, 1
      %p62 = por %p60, %p61
      %p64 = scmp.ne.s32.totalorder %s47, %s63
      %p65 = scmp.eq.s32.totalorder %s39, 0
      %p66 = por %p64, %p65
      %s68 = sadd.s32 %s67, 1
      %p71 = scmp.eq.s32.totalorder %s33, 1
      %p72 = scmp.ne.s32.totalorder %s67, %s69
      %p73 = scmp.eq.s32.totalorder %s33, 0
      %p74 = por %p72, %p73
      %p75 = scmp.ne.s32.totalorder %s67, %s69
      %p76 = scmp.eq.s32.totalorder %s38, 1
      %p77 = por %p75, %p76
      %p78 = scmp.ne.s32.totalorder %s69, %s70
      %p79 = scmp.eq.s32.totalorder %s38, 0
      %p80 = por %p78, %p79
      %p81 = scmp.ne.s32.totalorder %s69, %s70
      %p82 = scmp.eq.s32.totalorder %s39, 1
      %p83 = por %p81, %p82
      %p85 = scmp.ne.s32.totalorder %s70, %s84
      %p86 = scmp.eq.s32.totalorder %s39, 0
      %p87 = por %p85, %p86
      %s89 = sadd.s32 %s88, 1
      %p92 = scmp.eq.s32.totalorder %s33, 1
      %p93 = scmp.ne.s32.totalorder %s88, %s90
      %p94 = scmp.eq.s32.totalorder %s33, 0
      %p95 = por %p93, %p94
      %p96 = scmp.ne.s32.totalorder %s88, %s90
      %p97 = scmp.eq.s32.totalorder %s38, 1
      %p98 = por %p96, %p97
      %p99 = scmp.ne.s32.totalorder %s90, %s91
      %p100 = scmp.eq.s32.totalorder %s38, 0
      %p101 = por %p99, %p100
      %p102 = scmp.ne.s32.totalorder %s90, %s91
      %p103 = scmp.eq.s32.totalorder %s39, 1
      %p104 = por %p102, %p103
      %p106 = scmp.ne.s32.totalorder %s91, %s105
      %p107 = scmp.eq.s32.totalorder %s39, 0
      %p108 = por %p106, %p107
      %s110 = sadd.s32 %s109, 1
      %p113 = scmp.eq.s32.totalorder %s33, 1
      %p114 = scmp.ne.s32.totalorder %s109, %s111
      %p115 = scmp.eq.s32.totalorder %s33, 0
      %p116 = por %p114, %p115
      %p117 = scmp.ne.s32.totalorder %s109, %s111
      %p118 = scmp.eq.s32.totalorder %s38, 1
      %p119 = por %p117, %p118
      %p120 = scmp.ne.s32.totalorder %s111, %s112
      %p121 = scmp.eq.s32.totalorder %s38, 0
      %p122 = por %p120, %p121
      %p123 = scmp.ne.s32.totalorder %s111, %s112
      %p124 = scmp.eq.s32.totalorder %s39, 1
      %p125 = por %p123, %p124
      %p127 = scmp.ne.s32.totalorder %s112, %s126
      %p128 = scmp.eq.s32.totalorder %s39, 0
      %p129 = por %p127, %p128
      %s131 = sadd.s32 %s130, 1
      %p134 = scmp.eq.s32.totalorder %s33, 1
      %p135 = scmp.ne.s32.totalorder %s130, %s132
      %p136 = scmp.eq.s32.totalorder %s33, 0
      %p137 = por %p135, %p136
      %p138 = scmp.ne.s32.totalorder %s130, %s132
      %p139 = scmp.eq.s32.totalorder %s38, 1
      %p140 = por %p138, %p139
      %p141 = scmp.ne.s32.totalorder %s132, %s133
      %p142 = scmp.eq.s32.totalorder %s38, 0
      %p143 = por %p141, %p142
      %p144 = scmp.ne.s32.totalorder %s132, %s133
      %p145 = scmp.eq.s32.totalorder %s39, 1
      %p146 = por %p144, %p145
      %p148 = scmp.ne.s32.totalorder %s133, %s147
      %p149 = scmp.eq.s32.totalorder %s39, 0
      %p150 = por %p148, %p149
      %s152 = sadd.s32 %s151, 1
      %p155 = scmp.eq.s32.totalorder %s33, 1
      %p156 = scmp.ne.s32.totalorder %s151, %s153
      %p157 = scmp.eq.s32.totalorder %s33, 0
      %p158 = por %p156, %p157
      %p159 = scmp.ne.s32.totalorder %s151, %s153
      %p160 = scmp.eq.s32.totalorder %s38, 1
      %p161 = por %p159, %p160
      %p162 = scmp.ne.s32.totalorder %s153, %s154
      %p163 = scmp.eq.s32.totalorder %s38, 0
      %p164 = por %p162, %p163
      %p165 = scmp.ne.s32.totalorder %s153, %s154
      %p166 = scmp.eq.s32.totalorder %s39, 1
      %p167 = por %p165, %p166
      %p169 = scmp.ne.s32.totalorder %s154, %s168
      %p170 = scmp.eq.s32.totalorder %s39, 0
      %p171 = por %p169, %p170
      %s173 = sadd.s32 %s172, 1
      %p176 = scmp.eq.s32.totalorder %s33, 1
      %p177 = scmp.ne.s32.totalorder %s172, %s174
      %p178 = scmp.eq.s32.totalorder %s33, 0
      %p179 = por %p177, %p178
      %p180 = scmp.ne.s32.totalorder %s172, %s174
      %p181 = scmp.eq.s32.totalorder %s38, 1
      %p182 = por %p180, %p181
      %p183 = scmp.ne.s32.totalorder %s174, %s175
      %p184 = scmp.eq.s32.totalorder %s38, 0
      %p185 = por %p183, %p184
      %p186 = scmp.ne.s32.totalorder %s174, %s175
      %p187 = scmp.eq.s32.totalorder %s39, 1
      %p188 = por %p186, %p187
      %p190 = scmp.ne.s32.totalorder %s175, %s189
      %p191 = scmp.eq.s32.totalorder %s39, 0
      %p192 = por %p190, %p191
      %s194 = sadd.s32 %s193, 1
      %p197 = scmp.eq.s32.totalorder %s33, 1
      %p198 = scmp.ne.s32.totalorder %s193, %s195
      %p199 = scmp.eq.s32.totalorder %s33, 0
      %p200 = por %p198, %p199
      %p201 = scmp.ne.s32.totalorder %s193, %s195
      %p202 = scmp.eq.s32.totalorder %s38, 1
      %p203 = por %p201, %p202
      %p204 = scmp.ne.s32.totalorder %s195, %s196
      %p205 = scmp.eq.s32.totalorder %s38, 0
      %p206 = por %p204, %p205
      %p207 = scmp.ne.s32.totalorder %s195, %s196
      %p208 = scmp.eq.s32.totalorder %s39, 1
      %p209 = por %p207, %p208
      %p211 = scmp.ne.s32.totalorder %s196, %s210
      %p212 = scmp.eq.s32.totalorder %s39, 0
      %p213 = por %p211, %p212
      %s215 = sadd.s32 %s214, 1
      %p218 = scmp.eq.s32.totalorder %s33, 1
      %p219 = scmp.ne.s32.totalorder %s214, %s216
      %p220 = scmp.eq.s32.totalorder %s33, 0
      %p221 = por %p219, %p220
      %p222 = scmp.ne.s32.totalorder %s214, %s216
      %p223 = scmp.eq.s32.totalorder %s38, 1
      %p224 = por %p222, %p223
      %p225 = scmp.ne.s32.totalorder %s216, %s217
      %p226 = scmp.eq.s32.totalorder %s38, 0
      %p227 = por %p225, %p226
      %p228 = scmp.ne.s32.totalorder %s216, %s217
      %p229 = scmp.eq.s32.totalorder %s39, 1
      %p230 = por %p228, %p229
      %p232 = scmp.ne.s32.totalorder %s217, %s231
      %p233 = scmp.eq.s32.totalorder %s39, 0
      %p234 = por %p232, %p233
      %s236 = sadd.s32 %s235, 1
      %p239 = scmp.eq.s32.totalorder %s33, 1
      %p240 = scmp.ne.s32.totalorder %s235, %s237
      %p241 = scmp.eq.s32.totalorder %s33, 0
      %p242 = por %p240, %p241
      %p243 = scmp.ne.s32.totalorder %s235, %s237
      %p244 = scmp.eq.s32.totalorder %s38, 1
      %p245 = por %p243, %p244
      %p246 = scmp.ne.s32.totalorder %s237, %s238
      %p247 = scmp.eq.s32.totalorder %s38, 0
      %p248 = por %p246, %p247
      %p249 = scmp.ne.s32.totalorder %s237, %s238
      %p250 = scmp.eq.s32.totalorder %s39, 1
      %p251 = por %p249, %p250
      %p253 = scmp.ne.s32.totalorder %s238, %s252
      %p254 = scmp.eq.s32.totalorder %s39, 0
      %p255 = por %p253, %p254
      %s257 = sadd.s32 %s256, 1
      %p260 = scmp.eq.s32.totalorder %s33, 1
      %p261 = scmp.ne.s32.totalorder %s256, %s258
      %p262 = scmp.eq.s32.totalorder %s33, 0
      %p263 = por %p261, %p262
      %p264 = scmp.ne.s32.totalorder %s256, %s258
      %p265 = scmp.eq.s32.totalorder %s38, 1
      %p266 = por %p264, %p265
      %p267 = scmp.ne.s32.totalorder %s258, %s259
      %p268 = scmp.eq.s32.totalorder %s38, 0
      %p269 = por %p267, %p268
      %p270 = scmp.ne.s32.totalorder %s258, %s259
      %p271 = scmp.eq.s32.totalorder %s39, 1
      %p272 = por %p270, %p271
      %p274 = scmp.ne.s32.totalorder %s259, %s273
      %p275 = scmp.eq.s32.totalorder %s39, 0
      %p276 = por %p274, %p275
      %s278 = sadd.s32 %s277, 1
      %p281 = scmp.eq.s32.totalorder %s33, 1
      %p282 = scmp.ne.s32.totalorder %s277, %s279
      %p283 = scmp.eq.s32.totalorder %s33, 0
      %p284 = por %p282, %p283
      %p285 = scmp.ne.s32.totalorder %s277, %s279
      %p286 = scmp.eq.s32.totalorder %s38, 1
      %p287 = por %p285, %p286
      %p288 = scmp.ne.s32.totalorder %s279, %s280
      %p289 = scmp.eq.s32.totalorder %s38, 0
      %p290 = por %p288, %p289
      %p291 = scmp.ne.s32.totalorder %s279, %s280
      %p292 = scmp.eq.s32.totalorder %s39, 1
      %p293 = por %p291, %p292
      %p295 = scmp.ne.s32.totalorder %s280, %s294
      %p296 = scmp.eq.s32.totalorder %s39, 0
      %p297 = por %p295, %p296
      %s299 = sadd.s32 %s298, 1
      %p302 = scmp.eq.s32.totalorder %s33, 1
      %p303 = scmp.ne.s32.totalorder %s298, %s300
      %p304 = scmp.eq.s32.totalorder %s33, 0
      %p305 = por %p303, %p304
      %p306 = scmp.ne.s32.totalorder %s298, %s300
      %p307 = scmp.eq.s32.totalorder %s38, 1
      %p308 = por %p306, %p307
      %p309 = scmp.ne.s32.totalorder %s300, %s301
      %p310 = scmp.eq.s32.totalorder %s38, 0
      %p311 = por %p309, %p310
      %p312 = scmp.ne.s32.totalorder %s300, %s301
      %p313 = scmp.eq.s32.totalorder %s39, 1
      %p314 = por %p312, %p313
      %p316 = scmp.ne.s32.totalorder %s301, %s315
      %p317 = scmp.eq.s32.totalorder %s39, 0
      %p318 = por %p316, %p317
      %s320 = sadd.s32 %s319, 1
      %p323 = scmp.eq.s32.totalorder %s33, 1
      %p324 = scmp.ne.s32.totalorder %s319, %s321
      %p325 = scmp.eq.s32.totalorder %s33, 0
      %p326 = por %p324, %p325
      %p327 = scmp.ne.s32.totalorder %s319, %s321
      %p328 = scmp.eq.s32.totalorder %s38, 1
      %p329 = por %p327, %p328
      %p330 = scmp.ne.s32.totalorder %s321, %s322
      %p331 = scmp.eq.s32.totalorder %s38, 0
      %p332 = por %p330, %p331
      %p333 = scmp.ne.s32.totalorder %s321, %s322
      %p334 = scmp.eq.s32.totalorder %s39, 1
      %p335 = por %p333, %p334
      %p337 = scmp.ne.s32.totalorder %s322, %s336
      %p338 = scmp.eq.s32.totalorder %s39, 0
      %p339 = por %p337, %p338
      %s341 = sadd.s32 %s340, 1
      %p344 = scmp.eq.s32.totalorder %s33, 1
      %p345 = scmp.ne.s32.totalorder %s340, %s342
      %p346 = scmp.eq.s32.totalorder %s33, 0
      %p347 = por %p345, %p346
      %p348 = scmp.ne.s32.totalorder %s340, %s342
      %p349 = scmp.eq.s32.totalorder %s38, 1
      %p350 = por %p348, %p349
      %p351 = scmp.ne.s32.totalorder %s342, %s343
      %p352 = scmp.eq.s32.totalorder %s38, 0
      %p353 = por %p351, %p352
      %p354 = scmp.ne.s32.totalorder %s342, %s343
      %p355 = scmp.eq.s32.totalorder %s39, 1
      %p356 = por %p354, %p355
      %p358 = scmp.ne.s32.totalorder %s343, %s357
      %p359 = scmp.eq.s32.totalorder %s39, 0
      %p360 = por %p358, %p359
      %s362 = sadd.s32 %s361, 1
      %p365 = scmp.eq.s32.totalorder %s33, 1
      %p366 = scmp.ne.s32.totalorder %s361, %s363
      %p367 = scmp.eq.s32.totalorder %s33, 0
      %p368 = por %p366, %p367
      %p369 = scmp.ne.s32.totalorder %s361, %s363
      %p370 = scmp.eq.s32.totalorder %s38, 1
      %p371 = por %p369, %p370
      %p372 = scmp.ne.s32.totalorder %s363, %s364
      %p373 = scmp.eq.s32.totalorder %s38, 0
      %p374 = por %p372, %p373
      %p375 = scmp.ne.s32.totalorder %s363, %s364
      %p376 = scmp.eq.s32.totalorder %s39, 1
      %p377 = por %p375, %p376
      %p379 = scmp.ne.s32.totalorder %s364, %s378
      %p380 = scmp.eq.s32.totalorder %s39, 0
      %p381 = por %p379, %p380
      %s383 = sadd.s32 %s382, 1
      %p386 = scmp.eq.s32.totalorder %s33, 1
      %p387 = scmp.ne.s32.totalorder %s382, %s384
      %p388 = scmp.eq.s32.totalorder %s33, 0
      %p389 = por %p387, %p388
      %p390 = scmp.ne.s32.totalorder %s382, %s384
      %p391 = scmp.eq.s32.totalorder %s38, 1
      %p392 = por %p390, %p391
      %p393 = scmp.ne.s32.totalorder %s384, %s385
      %p394 = scmp.eq.s32.totalorder %s38, 0
      %p395 = por %p393, %p394
      %p396 = scmp.ne.s32.totalorder %s384, %s385
      %p397 = scmp.eq.s32.totalorder %s39, 1
      %p398 = por %p396, %p397
      %p400 = scmp.ne.s32.totalorder %s385, %s399
      %p401 = scmp.eq.s32.totalorder %s39, 0
      %p402 = por %p400, %p401
      %s404 = sadd.s32 %s403, 1
      %p407 = scmp.eq.s32.totalorder %s33, 1
      %p408 = scmp.ne.s32.totalorder %s403, %s405
      %p409 = scmp.eq.s32.totalorder %s33, 0
      %p410 = por %p408, %p409
      %p411 = scmp.ne.s32.totalorder %s403, %s405
      %p412 = scmp.eq.s32.totalorder %s38, 1
      %p413 = por %p411, %p412
      %p414 = scmp.ne.s32.totalorder %s405, %s406
      %p415 = scmp.eq.s32.totalorder %s38, 0
      %p416 = por %p414, %p415
      %p417 = scmp.ne.s32.totalorder %s405, %s406
      %p418 = scmp.eq.s32.totalorder %s39, 1
      %p419 = por %p417, %p418
      %p421 = scmp.ne.s32.totalorder %s406, %s420
      %p422 = scmp.eq.s32.totalorder %s39, 0
      %p423 = por %p421, %p422
      %s424 = ssub.s32 %s33, %s40
      %p425 = scmp.eq.s32.totalorder %s424, 0
      %s427 = sadd.s32 %s426, 1
      %s428 = scalar_select %p425, %s426, %s427
      %p431 = pneg %p425
      %p432 = scmp.eq.s32.totalorder %s33, 1
      %p433 = por %p431, %p432
      %p434 = scmp.ne.s32.totalorder %s426, %s429
      %p435 = scmp.eq.s32.totalorder %s33, 0
      %p436 = por %p434, %p435
      %p437 = scmp.ne.s32.totalorder %s426, %s429
      %p438 = scmp.eq.s32.totalorder %s38, 1
      %p439 = por %p437, %p438
      %p440 = scmp.ne.s32.totalorder %s429, %s430
      %p441 = scmp.eq.s32.totalorder %s38, 0
      %p442 = por %p440, %p441
      %p443 = scmp.ne.s32.totalorder %s429, %s430
      %p444 = scmp.eq.s32.totalorder %s39, 1
      %p445 = por %p443, %p444
      %p447 = scmp.ne.s32.totalorder %s430, %s446
      %p448 = scmp.eq.s32.totalorder %s39, 0
      %p449 = por %p447, %p448
      %s450 = ssub.s32 %s33, %s40
      %p451 = scmp.eq.s32.totalorder %s450, 0
      %s453 = sadd.s32 %s452, 1
      %s454 = scalar_select %p451, %s452, %s453
      %p457 = pneg %p451
      %p458 = scmp.eq.s32.totalorder %s33, 1
      %p459 = por %p457, %p458
      %p460 = scmp.ne.s32.totalorder %s452, %s455
      %p461 = scmp.eq.s32.totalorder %s33, 0
      %p462 = por %p460, %p461
      %p463 = scmp.ne.s32.totalorder %s452, %s455
      %p464 = scmp.eq.s32.totalorder %s38, 1
      %p465 = por %p463, %p464
      %p466 = scmp.ne.s32.totalorder %s455, %s456
      %p467 = scmp.eq.s32.totalorder %s38, 0
      %p468 = por %p466, %p467
      %p469 = scmp.ne.s32.totalorder %s455, %s456
      %p470 = scmp.eq.s32.totalorder %s39, 1
      %p471 = por %p469, %p470
      %p473 = scmp.ne.s32.totalorder %s456, %s472
      %p474 = scmp.eq.s32.totalorder %s39, 0
      %p475 = por %p473, %p474
      %s476 = ssub.s32 %s33, %s40
      %p477 = scmp.eq.s32.totalorder %s476, 0
      %s479 = sadd.s32 %s478, 1
      %s480 = scalar_select %p477, %s478, %s479
      %p483 = pneg %p477
      %p484 = scmp.eq.s32.totalorder %s33, 1
      %p485 = por %p483, %p484
      %p486 = scmp.ne.s32.totalorder %s478, %s481
      %p487 = scmp.eq.s32.totalorder %s33, 0
      %p488 = por %p486, %p487
      %p489 = scmp.ne.s32.totalorder %s478, %s481
      %p490 = scmp.eq.s32.totalorder %s38, 1
      %p491 = por %p489, %p490
      %p492 = scmp.ne.s32.totalorder %s481, %s482
      %p493 = scmp.eq.s32.totalorder %s38, 0
      %p494 = por %p492, %p493
      %p495 = scmp.ne.s32.totalorder %s481, %s482
      %p496 = scmp.eq.s32.totalorder %s39, 1
      %p497 = por %p495, %p496
      %p499 = scmp.ne.s32.totalorder %s482, %s498
      %p500 = scmp.eq.s32.totalorder %s39, 0
      %p501 = por %p499, %p500
      %p502 = scmp.le.s32.totalorder 1, %s33
      %p503 = scmp.lt.s32.totalorder %s33, 3
      %p504 = pnand %p502, %p503
      %p505 = pneg %p504
      // Predicated region
      $region9: #{segmenter_forward.4} parent=5 // pred_check
        _
      $region10: #{segmenter_forward.4} parent=5 // pred_check_branch
        %507 = sbr.rel (%p504) target = $region12
      $region11: #{segmenter_forward.4} parent=5 // pred_region
        %s508 = ssub.s32 %s33, 1
        // Predicated region
        $region13: #{segmenter_forward.4} parent=11 // pred_check
          %p509 = pneg %p80
        $region14: #{segmenter_forward.4} parent=11 // pred_check_branch
          %511 = sbr.rel (%p509) target = $region16
        $region15: #{segmenter_forward.4} parent=11 // pred_region
          _
        $region16: #{segmenter_forward.4} parent=11 // pred_fallthru
          _
        // Predicated region
        $region17: #{segmenter_forward.4} parent=11 // pred_check
          %p512 = pneg %p101
        $region18: #{segmenter_forward.4} parent=11 // pred_check_branch
          %514 = sbr.rel (%p512) target = $region20
        $region19: #{segmenter_forward.4} parent=11 // pred_region
          _
        $region20: #{segmenter_forward.4} parent=11 // pred_fallthru
          _
        // Predicated region
        $region21: #{segmenter_forward.4} parent=11 // pred_check
          %p515 = pneg %p122
        $region22: #{segmenter_forward.4} parent=11 // pred_check_branch
          %517 = sbr.rel (%p515) target = $region24
        $region23: #{segmenter_forward.4} parent=11 // pred_region
          _
        $region24: #{segmenter_forward.4} parent=11 // pred_fallthru
          _
        // Predicated region
        $region25: #{segmenter_forward.4} parent=11 // pred_check
          %p518 = pneg %p143
        $region26: #{segmenter_forward.4} parent=11 // pred_check_branch
          %520 = sbr.rel (%p518) target = $region28
        $region27: #{segmenter_forward.4} parent=11 // pred_region
          _
        $region28: #{segmenter_forward.4} parent=11 // pred_fallthru
          _
        // Predicated region
        $region29: #{segmenter_forward.4} parent=11 // pred_check
          %p521 = pneg %p164
        $region30: #{segmenter_forward.4} parent=11 // pred_check_branch
          %523 = sbr.rel (%p521) target = $region32
        $region31: #{segmenter_forward.4} parent=11 // pred_region
          _
        $region32: #{segmenter_forward.4} parent=11 // pred_fallthru
          _
        // Predicated region
        $region33: #{segmenter_forward.4} parent=11 // pred_check
          %p524 = pneg %p185
        $region34: #{segmenter_forward.4} parent=11 // pred_check_branch
          %526 = sbr.rel (%p524) target = $region36
        $region35: #{segmenter_forward.4} parent=11 // pred_region
          _
        $region36: #{segmenter_forward.4} parent=11 // pred_fallthru
          _
        // Predicated region
        $region37: #{segmenter_forward.4} parent=11 // pred_check
          %p527 = pneg %p206
        $region38: #{segmenter_forward.4} parent=11 // pred_check_branch
          %529 = sbr.rel (%p527) target = $region40
        $region39: #{segmenter_forward.4} parent=11 // pred_region
          _
        $region40: #{segmenter_forward.4} parent=11 // pred_fallthru
          _
        // Predicated region
        $region41: #{segmenter_forward.4} parent=11 // pred_check
          %p530 = pneg %p227
        $region42: #{segmenter_forward.4} parent=11 // pred_check_branch
          %532 = sbr.rel (%p530) target = $region44
        $region43: #{segmenter_forward.4} parent=11 // pred_region
          _
        $region44: #{segmenter_forward.4} parent=11 // pred_fallthru
          _
        // Predicated region
        $region45: #{segmenter_forward.4} parent=11 // pred_check
          %p533 = pneg %p248
        $region46: #{segmenter_forward.4} parent=11 // pred_check_branch
          %535 = sbr.rel (%p533) target = $region48
        $region47: #{segmenter_forward.4} parent=11 // pred_region
          _
        $region48: #{segmenter_forward.4} parent=11 // pred_fallthru
          _
        // Predicated region
        $region49: #{segmenter_forward.4} parent=11 // pred_check
          %p536 = pneg %p269
        $region50: #{segmenter_forward.4} parent=11 // pred_check_branch
          %538 = sbr.rel (%p536) target = $region52
        $region51: #{segmenter_forward.4} parent=11 // pred_region
          _
        $region52: #{segmenter_forward.4} parent=11 // pred_fallthru
          _
        // Predicated region
        $region53: #{segmenter_forward.4} parent=11 // pred_check
          %p539 = pneg %p290
        $region54: #{segmenter_forward.4} parent=11 // pred_check_branch
          %541 = sbr.rel (%p539) target = $region56
        $region55: #{segmenter_forward.4} parent=11 // pred_region
          _
        $region56: #{segmenter_forward.4} parent=11 // pred_fallthru
          _
        // Predicated region
        $region57: #{segmenter_forward.4} parent=11 // pred_check
          %p542 = pneg %p311
        $region58: #{segmenter_forward.4} parent=11 // pred_check_branch
          %544 = sbr.rel (%p542) target = $region60
        $region59: #{segmenter_forward.4} parent=11 // pred_region
          _
        $region60: #{segmenter_forward.4} parent=11 // pred_fallthru
          _
        // Predicated region
        $region61: #{segmenter_forward.4} parent=11 // pred_check
          %p545 = pneg %p332
        $region62: #{segmenter_forward.4} parent=11 // pred_check_branch
          %547 = sbr.rel (%p545) target = $region64
        $region63: #{segmenter_forward.4} parent=11 // pred_region
          _
        $region64: #{segmenter_forward.4} parent=11 // pred_fallthru
          _
        // Predicated region
        $region65: #{segmenter_forward.4} parent=11 // pred_check
          %p548 = pneg %p353
        $region66: #{segmenter_forward.4} parent=11 // pred_check_branch
          %550 = sbr.rel (%p548) target = $region68
        $region67: #{segmenter_forward.4} parent=11 // pred_region
          _
        $region68: #{segmenter_forward.4} parent=11 // pred_fallthru
          _
        // Predicated region
        $region69: #{segmenter_forward.4} parent=11 // pred_check
          %p551 = pneg %p374
        $region70: #{segmenter_forward.4} parent=11 // pred_check_branch
          %553 = sbr.rel (%p551) target = $region72
        $region71: #{segmenter_forward.4} parent=11 // pred_region
          _
        $region72: #{segmenter_forward.4} parent=11 // pred_fallthru
          _
        // Predicated region
        $region73: #{segmenter_forward.4} parent=11 // pred_check
          %p554 = pneg %p395
        $region74: #{segmenter_forward.4} parent=11 // pred_check_branch
          %556 = sbr.rel (%p554) target = $region76
        $region75: #{segmenter_forward.4} parent=11 // pred_region
          _
        $region76: #{segmenter_forward.4} parent=11 // pred_fallthru
          _
        // Predicated region
        $region77: #{segmenter_forward.4} parent=11 // pred_check
          %p557 = pneg %p416
        $region78: #{segmenter_forward.4} parent=11 // pred_check_branch
          %559 = sbr.rel (%p557) target = $region80
        $region79: #{segmenter_forward.4} parent=11 // pred_region
          _
        $region80: #{segmenter_forward.4} parent=11 // pred_fallthru
          _
      $region12: #{segmenter_forward.4} parent=5 // pred_fallthru
        _
      %p560 = scmp.lt.s32.totalorder %s33, 2
      // Predicated region
      $region81: #{segmenter_forward.4} parent=5 // pred_check
        %p561 = pneg %p560
      $region82: #{segmenter_forward.4} parent=5 // pred_check_branch
        %563 = sbr.rel (%p561) target = $region84
      $region83: #{segmenter_forward.4} parent=5 // pred_region
        // Predicated region
        $region85: #{segmenter_forward.4} parent=83 // pred_check
          %p564 = pneg %p53
        $region86: #{segmenter_forward.4} parent=83 // pred_check_branch
          %566 = sbr.rel (%p564) target = $region88
        $region87: #{segmenter_forward.4} parent=83 // pred_region
          %p567 = scmp.lt.s32.totalorder %s33, 1
          %s568 = scalar_select %p567, %s33, 1
          %s569 = smul.addr %s568, 8
          %s570 = scalar_lea.vmem %s0, %s569
        $region88: #{segmenter_forward.4} parent=83 // pred_fallthru
          _
      $region84: #{segmenter_forward.4} parent=5 // pred_fallthru
        _
      %p571 = scmp.le.s32.totalorder 1, %s33
      %p572 = scmp.lt.s32.totalorder %s33, 3
      %p573 = pnand %p571, %p572
      %p574 = pneg %p573
      // Predicated region
      $region89: #{segmenter_forward.4} parent=5 // pred_check
        _
      $region90: #{segmenter_forward.4} parent=5 // pred_check_branch
        %576 = sbr.rel (%p573) target = $region92
      $region91: #{segmenter_forward.4} parent=5 // pred_region
        %s577 = ssub.s32 %s33, 1
        %p578 = scmp.lt.s32.totalorder %s38, 1
        %s579 = scalar_select %p578, %s38, 1
        %s580 = smul.addr %s579, 8
        %s581 = scalar_lea.vmem %s0, %s580
        %p582 = pneg %p59
        %p583 = pneg %p56
        %p584 = pneg %p80
        %p585 = pneg %p77
        %p586 = pneg %p101
        %p587 = pneg %p98
        %p588 = pneg %p122
        %p589 = pneg %p119
        %p590 = pneg %p143
        %p591 = pneg %p140
        %p592 = pneg %p164
        %p593 = pneg %p161
        %p594 = pneg %p185
        %p595 = pneg %p182
        %p596 = pneg %p206
        %p597 = pneg %p203
        %p598 = pneg %p227
        %p599 = pneg %p224
        %p600 = pneg %p248
        %p601 = pneg %p245
        %p602 = pneg %p269
        %p603 = pneg %p266
        %p604 = pneg %p290
        %p605 = pneg %p287
        %p606 = pneg %p311
        %p607 = pneg %p308
        %p608 = pneg %p332
        %p609 = pneg %p329
        %p610 = pneg %p353
        %p611 = pneg %p350
        %p612 = pneg %p374
        %p613 = pneg %p371
        %p614 = pneg %p395
        %p615 = pneg %p392
        %p616 = pneg %p416
        %p617 = pneg %p413
        %p618 = pneg %p442
        %p619 = pneg %p439
        %p620 = scmp.lt.s32.totalorder %s38, 1
        %s621 = scalar_select %p620, %s38, 1
        %s622 = smul.addr %s621, 4
        %s623 = scalar_lea.vmem %s18, %s622
        %p624 = pneg %p468
        %p625 = pneg %p465
        %s626 = sand.u32 %s455, 1
        %s627 = scalar_lea.sflag [#allocation3], %s626
        %s628 = sand.u32 %s455, 1
        %s629 = scalar_lea.vmem [#allocation2], %s628
        %p630 = pneg %p494
        %p631 = pneg %p491
        %s632 = sand.u32 %s481, 1
        %s633 = scalar_lea.sflag [#allocation5], %s632
        %s634 = sand.u32 %s481, 1
        %s635 = scalar_lea.vmem [#allocation4], %s634
        %p636 = scmp.lt.s32.totalorder %s38, 1
        %s637 = scalar_select %p636, %s38, 1
        %s638 = smul.addr %s637, 8
        %s639 = scalar_lea.vmem %s0, %s638
        %p640 = scmp.lt.s32.totalorder %s38, 1
        %s641 = scalar_select %p640, %s38, 1
        %s642 = smul.addr %s641, 4
        %s643 = scalar_lea.vmem %s18, %s642
        %v645 = vld [vmem:[%s639] sm:$0x1f]
        %v646 = vld [vmem:[%s1] sm:$0x1]
        %v647 = vld [vmem:[%s2] sm:$0x1]
        %vm648 = vcmask 258048
        %v649 = vsel %vm648, %v645, 0.0
        %650 = vadd.xlane.f32.xlu0 %v649
        %v651 = vpop.xlane.xlu0 %650
        %v652 = vrcp.pop 32.0
        %v653 = vmul.f32 32.0, %v652
        %v654 = vsub.f32 1.0, %v653
        %v655 = vmul.f32 %v652, %v654
        %v656 = vadd.f32 %v652, %v655
        %vm657 = vweird.f32 %v652
        %v658 = vsel %vm657, %v652, %v656
        %v659 = vmul.f32 %v651, %v658
        %v660 = vsub.f32 %v645, %v659
        %v661 = vmul.f32 %v660, %v660
        %v662 = vsel %vm648, %v661, 0.0
        %663 = vadd.xlane.f32.xlu0 %v662
        %v664 = vpop.xlane.xlu0 %663
        %v665 = vmul.f32 %v664, %v658
        %v666 = vadd.f32 %v665, 1e-06
        %v667 = vrsqrt.pop %v666
        %v668 = vmul.f32 %v667, %v666
        %v669 = vmul.f32 %v668, %v667
        %v670 = vmul.f32 0.5, %v669
        %v671 = vsub.f32 1.5, %v670
        %v672 = vmul.f32 %v667, %v671
        %vm673 = vweird.f32 %v666
        %vm674 = vweird.f32 %v667
        %vm675 = vmor %vm673, %vm674
        %v676 = vsel %vm675, %v667, %v672
        %v677 = vmul.f32 %v660, %v676
        %v679 = vperm.slane %v646, 0
        %v681 = vmul.f32 %v677, %v679
        %v683 = vperm.slane %v647, 0
        %v685 = vadd.f32 %v681, %v683
        %v686 = vpack.c.bf16 %v685, %v685
        %v687 = vld [vmem:[%s3] sm:$0xf]
        %v688 = vld [vmem:[%s3 + $0x4] sm:$0xf]
        %v689 = vld [vmem:[%s3 + $0x8] sm:$0xf]
        %v690 = vld [vmem:[%s3 + $0xc] sm:$0xf]
        %v691 = vld [vmem:[%s4] sm:$0x1]
        %v693 = vperm.slane %v691, 0
        %v699 = vunpack.c.l.b16 %v687
        %v700 = vunpack.c.l.b16 %v688
        %v701 = vunpack.c.l.b16 %v689
        %v702 = vunpack.c.l.b16 %v690
        %v703 = vpack.c.b16 %v700, %v699
        %v704 = vpack.c.b16 %v702, %v701
        %vm707 = vcmask 261120
        %v709 = vsel %vm707, %v686, 0
        %711 = vmatpush.bf16.msra.mxu0 0
        %712 = vmatpush.bf16.msra.mxu0 0
        %713 = vmatpush.bf16.msra.mxu0 0
        %714 = vmatpush.bf16.msra.mxu0 0
        %715 = vmatpush.bf16.msra.mxu0 0
        %716 = vmatpush.bf16.msra.mxu0 0
        %717 = vmatpush.bf16.msra.mxu0 %v704
        %718 = vmatpush.bf16.msra.mxu0 %v703
        %719 = vmatmul.bf16.gmra.mxu0 %v709
        %v720 = vpop.f32.mrf.mxu0
        %v721 = vadd.f32 %v693, %v720
        %v722 = vpop.f32.mrf.mxu0
        %723 = vdwg.mxu0
        %v724 = vld [vmem:[%s5] sm:$0xf]
        %v725 = vld [vmem:[%s5 + $0x4] sm:$0xf]
        %v726 = vld [vmem:[%s5 + $0x8] sm:$0xf]
        %v727 = vld [vmem:[%s5 + $0xc] sm:$0xf]
        %v728 = vpack.c.bf16 %v721, %v721
        %730 = vrot.lane.b32.xlu0 %v728, 96
        %v731 = vpop.permute.xlu0 %730
        %vm732 = vcmask 130048
        %v734 = vsel %vm732, %v728, 0
        %v737 = vsel %vm732, %v731, 0
        %739 = vmatpush.bf16.xpose.msra.mxu0 0
        %740 = vmatpush.bf16.xpose.msra.mxu0 0
        %741 = vmatpush.bf16.xpose.msra.mxu0 0
        %742 = vmatpush.bf16.xpose.msra.mxu0 0
        %743 = vmatpush.bf16.xpose.msra.mxu0 0
        %744 = vmatpush.bf16.xpose.msra.mxu0 0
        %745 = vmatpush.bf16.xpose.msra.mxu0 0
        %746 = vmatpush.bf16.xpose.msra.mxu0 %v737
        %747 = vmatmul.bf16.gmra.mxu0 %v734
        %v748 = vpop.f32.mrf.mxu0
        %v749 = vadd.f32 0.0, %v748
        %v750 = vpop.f32.mrf.mxu0
        %751 = vdwg.mxu0
        %v752 = vmul.f32 %v749, 0.25
        %vm753 = vcmask 36864
        %v754 = vsel %vm753, %v752, -inf
        %755 = vmax.xlane.f32.xlu0 %v754
        %v756 = vpop.xlane.xlu0 %755
        %v757 = vsub.f32 %v752, %v756
        %v758 = vmul.f32 %v757, 1.442695
        %v759 = vpow.pop %v758
        %v760 = vsel %vm753, %v759, 0.0
        %761 = vadd.xlane.f32.xlu0 %v760
        %v762 = vpop.xlane.xlu0 %761
        %v763 = vrcp.pop %v762
        %v764 = vmul.f32 %v759, %v763
        %v765 = vpack.c.bf16 %v764, %v764
        %766 = vrot.lane.b32.xlu0 %v728, 64
        %v767 = vpop.permute.xlu0 %766
        %vm768 = vcmask 39936
        %v770 = vsel %vm768, %v765, 0
        %vm772 = vcmask 1041408
        %vm773 = vcmask 1042432
        %v774 = vsel %vm772, 4294967295, 65535
        %v775 = vsel %vm773, %v774, 0
        %v777 = vand.u32 %v767, %v775
        %779 = vmatpush.bf16.msra.mxu0 0
        %780 = vmatpush.bf16.msra.mxu0 0
        %781 = vmatpush.bf16.msra.mxu0 0
        %782 = vmatpush.bf16.msra.mxu0 0
        %783 = vmatpush.bf16.msra.mxu0 0
        %784 = vmatpush.bf16.msra.mxu0 0
        %785 = vmatpush.bf16.msra.mxu0 0
        %786 = vmatpush.bf16.msra.mxu0 %v777
        %787 = vmatmul.bf16.gmra.mxu0 %v770
        %v788 = vpop.f32.mrf.mxu0
        %v789 = vadd.f32 0.0, %v788
        %v790 = vpop.f32.mrf.mxu0
        %791 = vdwg.mxu0
        %v792 = vpack.c.bf16 %v789, %v789
        %v793 = vsel %vm753, %v764, 0.0
        %v794 = vrot.slane %v793, 4
        %v795 = vadd.f32 %v793, %v794
        %v796 = vrot.slane %v795, 2
        %v797 = vadd.f32 %v795, %v796
        %v798 = vrot.slane %v797, 1
        %v799 = vadd.f32 %v797, %v798
        %v800 = vadd.f32 %v799, 0.0
        %v801 = vlog2.pop %v762
        %v802 = vmul.f32 %v801, 0.6931472
        %v803 = vmul.f32 %v764, %v757
        %v804 = vsel %vm753, %v803, 0.0
        %805 = vadd.xlane.f32.xlu0 %v804
        %v806 = vpop.xlane.xlu0 %805
        %v807 = vsub.f32 %v802, %v806
        %v808 = vadd.f32 %v807, 0.0
        %809 = vrot.lane.b32.xlu0 %v728, 112
        %v810 = vpop.permute.xlu0 %809
        %811 = vrot.lane.b32.xlu0 %v728, 80
        %v812 = vpop.permute.xlu0 %811
        %v814 = vsel %vm732, %v810, 0
        %v817 = vsel %vm732, %v812, 0
        %819 = vmatpush.bf16.xpose.msra.mxu0 0
        %820 = vmatpush.bf16.xpose.msra.mxu0 0
        %821 = vmatpush.bf16.xpose.msra.mxu0 0
        %822 = vmatpush.bf16.xpose.msra.mxu0 0
        %823 = vmatpush.bf16.xpose.msra.mxu0 0
        %824 = vmatpush.bf16.xpose.msra.mxu0 0
        %825 = vmatpush.bf16.xpose.msra.mxu0 0
        %826 = vmatpush.bf16.xpose.msra.mxu0 %v817
        %827 = vmatmul.bf16.gmra.mxu0 %v814
        %v828 = vpop.f32.mrf.mxu0
        %v829 = vadd.f32 0.0, %v828
        %v830 = vpop.f32.mrf.mxu0
        %831 = vdwg.mxu0
        %v832 = vmul.f32 %v829, 0.25
        %v833 = vsel %vm753, %v832, -inf
        %834 = vmax.xlane.f32.xlu0 %v833
        %v835 = vpop.xlane.xlu0 %834
        %v836 = vsub.f32 %v832, %v835
        %v837 = vmul.f32 %v836, 1.442695
        %v838 = vpow.pop %v837
        %v839 = vsel %vm753, %v838, 0.0
        %840 = vadd.xlane.f32.xlu0 %v839
        %v841 = vpop.xlane.xlu0 %840
        %v842 = vrcp.pop %v841
        %v843 = vmul.f32 %v838, %v842
        %v844 = vpack.c.bf16 %v843, %v843
        %845 = vrot.lane.b32.xlu0 %v728, 48
        %v846 = vpop.permute.xlu0 %845
        %v848 = vsel %vm768, %v844, 0
        %v851 = vand.u32 %v846, %v775
        %853 = vmatpush.bf16.msra.mxu0 0
        %854 = vmatpush.bf16.msra.mxu0 0
        %855 = vmatpush.bf16.msra.mxu0 0
        %856 = vmatpush.bf16.msra.mxu0 0
        %857 = vmatpush.bf16.msra.mxu0 0
        %858 = vmatpush.bf16.msra.mxu0 0
        %859 = vmatpush.bf16.msra.mxu0 0
        %860 = vmatpush.bf16.msra.mxu0 %v851
        %861 = vmatmul.bf16.gmra.mxu0 %v848
        %v862 = vpop.f32.mrf.mxu0
        %v863 = vadd.f32 0.0, %v862
        %v864 = vpop.f32.mrf.mxu0
        %865 = vdwg.mxu0
        %v866 = vpack.c.bf16 %v863, %v863
        %v869 = vunpack.c.l.b16 %v726
        %v870 = vunpack.c.l.b16 %v727
        %v871 = vpack.c.b16 %v870, %v869
        %v874 = vsel %vm732, %v866, 0
        %876 = vmatpush.bf16.msra.mxu0 0
        %877 = vmatpush.bf16.msra.mxu0 0
        %878 = vmatpush.bf16.msra.mxu0 0
        %879 = vmatpush.bf16.msra.mxu0 0
        %880 = vmatpush.bf16.msra.mxu0 0
        %881 = vmatpush.bf16.msra.mxu0 0
        %882 = vmatpush.bf16.msra.mxu0 0
        %883 = vmatpush.bf16.msra.mxu0 %v871
        %884 = vmatmul.bf16.gmra.mxu0 %v874
        %v885 = vpop.f32.mrf.mxu0
        %v886 = vadd.f32 0.0, %v885
        %v887 = vpop.f32.mrf.mxu0
        %888 = vdwg.mxu0
        %v891 = vunpack.c.l.b16 %v724
        %v892 = vunpack.c.l.b16 %v725
        %v893 = vpack.c.b16 %v892, %v891
        %v896 = vsel %vm732, %v792, 0
        %898 = vmatpush.bf16.msra.mxu0 0
        %899 = vmatpush.bf16.msra.mxu0 0
        %900 = vmatpush.bf16.msra.mxu0 0
        %901 = vmatpush.bf16.msra.mxu0 0
        %902 = vmatpush.bf16.msra.mxu0 0
        %903 = vmatpush.bf16.msra.mxu0 0
        %904 = vmatpush.bf16.msra.mxu0 0
        %905 = vmatpush.bf16.msra.mxu0 %v893
        %906 = vmatmul.bf16.gmra.mxu0 %v896
        %v907 = vpop.f32.mrf.mxu0
        %v908 = vadd.f32 %v886, %v907
        %v909 = vpop.f32.mrf.mxu0
        %910 = vdwg.mxu0
        %v911 = vsel %vm753, %v843, 0.0
        %v912 = vrot.slane %v911, 4
        %v913 = vadd.f32 %v911, %v912
        %v914 = vrot.slane %v913, 2
        %v915 = vadd.f32 %v913, %v914
        %v916 = vrot.slane %v915, 1
        %v917 = vadd.f32 %v915, %v916
        %v918 = vadd.f32 %v800, %v917
        %v919 = vlog2.pop %v841
        %v920 = vmul.f32 %v919, 0.6931472
        %v921 = vmul.f32 %v843, %v836
        %v922 = vsel %vm753, %v921, 0.0
        %923 = vadd.xlane.f32.xlu0 %v922
        %v924 = vpop.xlane.xlu0 %923
        %v925 = vsub.f32 %v920, %v924
        %v926 = vadd.f32 %v808, %v925
        %v927 = vld [vmem:[%s6] sm:$0x1]
        %v929 = vperm.slane %v927, 0
        %v931 = vadd.f32 %v908, %v929
        %v932 = vld [vmem:[%s7] sm:$0x1]
        %v933 = vxor.u32 %v932, 2147483648
        %v934 = vmul.f32 %v933, 1.442695
        %v935 = vpow.pop %v934
        %v936 = vadd.f32 %v935, 1.0
        %v937 = vrcp.pop %v936
        %v938 = vmul.f32 %v936, %v937
        %v939 = vsub.f32 1.0, %v938
        %v940 = vmul.f32 %v937, %v939
        %v941 = vadd.f32 %v937, %v940
        %vm942 = vweird.f32 %v936
        %vm943 = vweird.f32 %v937
        %vm944 = vmor %vm942, %vm943
        %v945 = vsel %vm944, %v937, %v941
        %v946 = vand.u32 2147483647, %v936
        %vm947 = vcmp.eq.f32.partialorder %v946, 8.507059e+37
        %v948 = vand.u32 %v936, 2147483648
        %v949 = vor.u32 1.1754944e-38, %v948
        %v950 = vsel %vm947, %v949, %v945
        %v951 = vmul.f32 1.0, %v950
        %v953 = vperm.slane %v951, 0
        %v955 = vmul.f32 %v931, %v953
        %v956 = vadd.f32 %v645, %v955
        %v957 = vld [vmem:[%s8] sm:$0x1]
        %v958 = vld [vmem:[%s9] sm:$0x1]
        %v959 = vsel %vm648, %v956, 0.0
        %960 = vadd.xlane.f32.xlu0 %v959
        %v961 = vpop.xlane.xlu0 %960
        %v962 = vmul.f32 %v961, %v658
        %v963 = vsub.f32 %v956, %v962
        %v964 = vmul.f32 %v963, %v963
        %v965 = vsel %vm648, %v964, 0.0
        %966 = vadd.xlane.f32.xlu0 %v965
        %v967 = vpop.xlane.xlu0 %966
        %v968 = vmul.f32 %v967, %v658
        %v969 = vadd.f32 %v968, 1e-06
        %v970 = vrsqrt.pop %v969
        %v971 = vmul.f32 %v970, %v969
        %v972 = vmul.f32 %v971, %v970
        %v973 = vmul.f32 0.5, %v972
        %v974 = vsub.f32 1.5, %v973
        %v975 = vmul.f32 %v970, %v974
        %vm976 = vweird.f32 %v969
        %vm977 = vweird.f32 %v970
        %vm978 = vmor %vm976, %vm977
        %v979 = vsel %vm978, %v970, %v975
        %v980 = vmul.f32 %v963, %v979
        %v982 = vperm.slane %v957, 0
        %v984 = vmul.f32 %v980, %v982
        %v986 = vperm.slane %v958, 0
        %v988 = vadd.f32 %v984, %v986
        %v989 = vpack.c.bf16 %v988, %v988
        %v990 = vld [vmem:[%s10] sm:$0xf]
        %v991 = vld [vmem:[%s10 + $0x4] sm:$0xf]
        %v992 = vld [vmem:[%s10 + $0x8] sm:$0xf]
        %v993 = vld [vmem:[%s10 + $0xc] sm:$0xf]
        %v994 = vld [vmem:[%s11] sm:$0x1]
        %v996 = vperm.slane %v994, 0
        %v1002 = vunpack.c.l.b16 %v990
        %v1003 = vunpack.c.l.b16 %v991
        %v1004 = vunpack.c.l.b16 %v992
        %v1005 = vunpack.c.l.b16 %v993
        %v1006 = vpack.c.b16 %v1003, %v1002
        %v1007 = vpack.c.b16 %v1005, %v1004
        %v1011 = vsel %vm707, %v989, 0
        %1013 = vmatpush.bf16.msra.mxu0 0
        %1014 = vmatpush.bf16.msra.mxu0 0
        %1015 = vmatpush.bf16.msra.mxu0 0
        %1016 = vmatpush.bf16.msra.mxu0 0
        %1017 = vmatpush.bf16.msra.mxu0 0
        %1018 = vmatpush.bf16.msra.mxu0 0
        %1019 = vmatpush.bf16.msra.mxu0 %v1007
        %1020 = vmatpush.bf16.msra.mxu0 %v1006
        %1021 = vmatmul.bf16.gmra.mxu0 %v1011
        %v1022 = vpop.f32.mrf.mxu0
        %v1023 = vadd.f32 %v996, %v1022
        %v1024 = vpop.f32.mrf.mxu0
        %1025 = vdwg.mxu0
        %v1026 = vmul.f32 %v1023, %v1023
        %v1027 = vmul.f32 %v1023, %v1026
        %v1028 = vmul.f32 %v1027, 0.044715
        %v1029 = vadd.f32 %v1023, %v1028
        %v1030 = vmul.f32 %v1029, 0.7978846
        %v1031 = vtanh.pop %v1030
        %v1032 = vadd.f32 %v1031, 1.0
        %v1033 = vmul.f32 %v1032, 0.5
        %v1034 = vmul.f32 %v1023, %v1033
        %v1035 = vpack.c.bf16 %v1034, %v1034
        %v1036 = vld [vmem:[%s12] sm:$0xf]
        %v1037 = vld [vmem:[%s12 + $0x4] sm:$0xf]
        %v1038 = vld [vmem:[%s12 + $0x8] sm:$0xf]
        %v1039 = vld [vmem:[%s12 + $0xc] sm:$0xf]
        %v1040 = vld [vmem:[%s12 + $0x10] sm:$0xf]
        %v1041 = vld [vmem:[%s12 + $0x14] sm:$0xf]
        %v1042 = vld [vmem:[%s12 + $0x18] sm:$0xf]
        %v1043 = vld [vmem:[%s12 + $0x1c] sm:$0xf]
        %v1044 = vld [vmem:[%s13] sm:$0x1]
        %v1046 = vperm.slane %v1044, 0
        %v1056 = vunpack.c.l.b16 %v1036
        %v1057 = vunpack.c.l.b16 %v1037
        %v1058 = vunpack.c.l.b16 %v1038
        %v1059 = vunpack.c.l.b16 %v1039
        %v1060 = vunpack.c.l.b16 %v1040
        %v1061 = vunpack.c.l.b16 %v1041
        %v1062 = vunpack.c.l.b16 %v1042
        %v1063 = vunpack.c.l.b16 %v1043
        %v1064 = vpack.c.b16 %v1057, %v1056
        %v1065 = vpack.c.b16 %v1059, %v1058
        %v1066 = vpack.c.b16 %v1061, %v1060
        %v1067 = vpack.c.b16 %v1063, %v1062
        %vm1072 = vcmask 523264
        %v1074 = vsel %vm1072, %v1035, 0
        %1076 = vmatpush.bf16.msra.mxu0 0
        %1077 = vmatpush.bf16.msra.mxu0 0
        %1078 = vmatpush.bf16.msra.mxu0 0
        %1079 = vmatpush.bf16.msra.mxu0 0
        %1080 = vmatpush.bf16.msra.mxu0 %v1067
        %1081 = vmatpush.bf16.msra.mxu0 %v1066
        %1082 = vmatpush.bf16.msra.mxu0 %v1065
        %1083 = vmatpush.bf16.msra.mxu0 %v1064
        %1084 = vmatmul.bf16.gmra.mxu0 %v1074
        %v1085 = vpop.f32.mrf.mxu0
        %v1086 = vadd.f32 %v1046, %v1085
        %v1087 = vpop.f32.mrf.mxu0
        %1088 = vdwg.mxu0
        %v1089 = vadd.f32 %v956, %v1086
        %v1090 = vld [vmem:[%s14] sm:$0x1]
        %v1091 = vld [vmem:[%s15] sm:$0x1]
        %v1092 = vsel %vm648, %v1089, 0.0
        %1093 = vadd.xlane.f32.xlu0 %v1092
        %v1094 = vpop.xlane.xlu0 %1093
        %v1095 = vmul.f32 %v1094, %v658
        %v1096 = vsub.f32 %v1089, %v1095
        %v1097 = vmul.f32 %v1096, %v1096
        %v1098 = vsel %vm648, %v1097, 0.0
        %1099 = vadd.xlane.f32.xlu0 %v1098
        %v1100 = vpop.xlane.xlu0 %1099
        %v1101 = vmul.f32 %v1100, %v658
        %v1102 = vadd.f32 %v1101, 1e-06
        %v1103 = vrsqrt.pop %v1102
        %v1104 = vmul.f32 %v1103, %v1102
        %v1105 = vmul.f32 %v1104, %v1103
        %v1106 = vmul.f32 0.5, %v1105
        %v1107 = vsub.f32 1.5, %v1106
        %v1108 = vmul.f32 %v1103, %v1107
        %vm1109 = vweird.f32 %v1102
        %vm1110 = vweird.f32 %v1103
        %vm1111 = vmor %vm1109, %vm1110
        %v1112 = vsel %vm1111, %v1103, %v1108
        %v1113 = vmul.f32 %v1096, %v1112
        %v1115 = vperm.slane %v1090, 0
        %v1117 = vmul.f32 %v1113, %v1115
        %v1119 = vperm.slane %v1091, 0
        %v1121 = vadd.f32 %v1117, %v1119
        %v1122 = vpack.c.bf16 %v1121, %v1121
        %v1123 = vld [vmem:[%s16] sm:$0xf]
        %v1124 = vld [vmem:[%s16 + $0x4] sm:$0xf]
        %v1125 = vld [vmem:[%s16 + $0x8] sm:$0xf]
        %v1126 = vld [vmem:[%s16 + $0xc] sm:$0xf]
        %v1127 = vld [vmem:[%s17] sm:$0x1]
        %v1129 = vperm.slane %v1127, 0
        %v1132 = vshrl.u32 %v1122, 16
        %v1134 = vshll.u32 %v1122, 16
        %v1136 = vrot.slane %v1134, 1
        %v1137 = vor.u32 %v1132, %v1136
        %v1142 = vunpack.c.l.b16 %v1123
        %v1143 = vunpack.c.l.b16 %v1124
        %v1144 = vunpack.c.l.b16 %v1125
        %v1145 = vunpack.c.l.b16 %v1126
        %v1146 = vpack.c.b16 %v1143, %v1142
        %v1147 = vpack.c.b16 %v1145, %v1144
        %v1151 = vsel %vm707, %v1137, 0
        %1153 = vmatpush.bf16.msra.mxu0 0
        %1154 = vmatpush.bf16.msra.mxu0 0
        %1155 = vmatpush.bf16.msra.mxu0 0
        %1156 = vmatpush.bf16.msra.mxu0 0
        %1157 = vmatpush.bf16.msra.mxu0 0
        %1158 = vmatpush.bf16.msra.mxu0 0
        %1159 = vmatpush.bf16.msra.mxu0 %v1147
        %1160 = vmatpush.bf16.msra.mxu0 %v1146
        %1161 = vmatmul.bf16.gmra.mxu0 %v1151
        %v1162 = vpop.f32.mrf.mxu0
        %v1163 = vadd.f32 %v1129, %v1162
        %v1164 = vpop.f32.mrf.mxu0
        %1165 = vdwg.mxu0
        %vm1166 = vcmask 27648
        %1167 = vst.msk [vmem:[%s643] sm:$0xf] %vm1166, %v1163
        %v1168 = vmul.f32 %v918, 0.1
        %vm1169 = vcmask 32768
        %1170 = vst.msk [vmem:[%s629] sm:$0x1] %vm1169, %v1168
        %1171 = vxpose.xlu0.b32.start [1/16] %v926, 128
        %1172 = vxpose.xlu0.b32.cont [2/16] 0.0, 128
        %1173 = vxpose.xlu0.b32.cont [3/16] 0.0, 128
        %1174 = vxpose.xlu0.b32.cont [4/16] 0.0, 128
        %1175 = vxpose.xlu0.b32.cont [5/16] 0.0, 128
        %1176 = vxpose.xlu0.b32.cont [6/16] 0.0, 128
        %1177 = vxpose.xlu0.b32.cont [7/16] 0.0, 128
        %1178 = vxpose.xlu0.b32.cont [8/16] 0.0, 128
        %1179 = vxpose.xlu0.b32.cont [9/16] 0.0, 128
        %1180 = vxpose.xlu0.b32.cont [10/16] 0.0, 128
        %1181 = vxpose.xlu0.b32.cont [11/16] 0.0, 128
        %1182 = vxpose.xlu0.b32.cont [12/16] 0.0, 128
        %1183 = vxpose.xlu0.b32.cont [13/16] 0.0, 128
        %1184 = vxpose.xlu0.b32.cont [14/16] 0.0, 128
        %1185 = vxpose.xlu0.b32.cont [15/16] 0.0, 128
        %1186 = vxpose.xlu0.b32.end [16/16] 0.0, 128
        %v1187 = vpop.trf.xlu0
        %v1188 = vpop.trf.xlu0
        %v1189 = vpop.trf.xlu0
        %v1190 = vpop.trf.xlu0
        %v1191 = vpop.trf.xlu0
        %v1192 = vpop.trf.xlu0
        %v1193 = vpop.trf.xlu0
        %v1194 = vpop.trf.xlu0
        %v1195 = vpop.trf.xlu0
        %v1196 = vpop.trf.xlu0
        %v1197 = vpop.trf.xlu0
        %v1198 = vpop.trf.xlu0
        %v1199 = vpop.trf.xlu0
        %v1200 = vpop.trf.xlu0
        %v1201 = vpop.trf.xlu0
        %v1202 = vpop.trf.xlu0
        %v1203 = vmul.f32 %v1187, 0.5
        %1204 = vst.msk [vmem:[%s635] sm:$0x1] %vm1169, %v1203
        %p1205 = scmp.lt.s32.totalorder %s38, 1
        %s1206 = scalar_select %p1205, %s38, 1
        %s1207 = smul.addr %s1206, 4
        %s1208 = scalar_lea.vmem %s18, %s1207
        %s1209 = sand.u32 %s455, 1
        %s1210 = scalar_lea.sflag [#allocation3], %s1209
        %s1211 = sand.u32 %s455, 1
        %s1212 = scalar_lea.vmem [#allocation2], %s1211
        %s1213 = sand.u32 %s481, 1
        %s1214 = scalar_lea.sflag [#allocation5], %s1213
        %s1215 = sand.u32 %s481, 1
        %s1216 = scalar_lea.vmem [#allocation4], %s1215
        // Predicated region
        $region93: #{segmenter_forward.4} parent=91 // pred_check
          %p1217 = pneg %p439
        $region94: #{segmenter_forward.4} parent=91 // pred_check_branch
          %1219 = sbr.rel (%p1217) target = $region96
        $region95: #{segmenter_forward.4} parent=91 // pred_region
          _
        $region96: #{segmenter_forward.4} parent=91 // pred_fallthru
          _
        // Predicated region
        $region97: #{segmenter_forward.4} parent=91 // pred_check
          %p1220 = pneg %p465
        $region98: #{segmenter_forward.4} parent=91 // pred_check_branch
          %1222 = sbr.rel (%p1220) target = $region100
        $region99: #{segmenter_forward.4} parent=91 // pred_region
          %1224 = vsyncadd %s1210, 0
          %s1225 = scalar_lea.hbm %s19, %s38
          %s1227 = sshll.u32 %s1212, 4
          %s1228 = int_to_ptr.vmem [resolvable:$true] %s1227
          %s1229 = sshll.u32 %s1225, 4
          %s1230 = int_to_ptr.hbm [resolvable:$true] %s1229
          %1232 = dma.vmem_to_hbm [thread:$0]  %s1228, 16, %s1230, %s1210
        $region100: #{segmenter_forward.4} parent=91 // pred_fallthru
          _
        // Predicated region
        $region101: #{segmenter_forward.4} parent=91 // pred_check
          %p1233 = pneg %p491
        $region102: #{segmenter_forward.4} parent=91 // pred_check_branch
          %1235 = sbr.rel (%p1233) target = $region104
        $region103: #{segmenter_forward.4} parent=91 // pred_region
          %1237 = vsyncadd %s1214, 0
          %s1238 = scalar_lea.hbm %s20, %s38
          %s1240 = sshll.u32 %s1216, 4
          %s1241 = int_to_ptr.vmem [resolvable:$true] %s1240
          %s1242 = sshll.u32 %s1238, 4
          %s1243 = int_to_ptr.hbm [resolvable:$true] %s1242
          %1245 = dma.vmem_to_hbm [thread:$0]  %s1241, 16, %s1243, %s1214
        $region104: #{segmenter_forward.4} parent=91 // pred_fallthru
          _
      $region92: #{segmenter_forward.4} parent=5 // pred_fallthru
        _
      %p1246 = scmp.le.s32.totalorder 2, %s33
      // Predicated region
      $region105: #{segmenter_forward.4} parent=5 // pred_check
        %p1247 = pneg %p1246
      $region106: #{segmenter_forward.4} parent=5 // pred_check_branch
        %1249 = sbr.rel (%p1247) target = $region108
      $region107: #{segmenter_forward.4} parent=5 // pred_region
        %s1250 = ssub.s32 %s33, 2
        // Predicated region
        $region109: #{segmenter_forward.4} parent=107 // pred_check
          %p1251 = pneg %p445
        $region110: #{segmenter_forward.4} parent=107 // pred_check_branch
          %1253 = sbr.rel (%p1251) target = $region112
        $region111: #{segmenter_forward.4} parent=107 // pred_region
          %p1254 = scmp.lt.s32.totalorder %s39, 1
          %s1255 = scalar_select %p1254, %s39, 1
          %s1256 = smul.addr %s1255, 4
          %s1257 = scalar_lea.vmem %s18, %s1256
        $region112: #{segmenter_forward.4} parent=107 // pred_fallthru
          _
        // Predicated region
        $region113: #{segmenter_forward.4} parent=107 // pred_check
          %p1258 = pneg %p471
        $region114: #{segmenter_forward.4} parent=107 // pred_check_branch
          %1260 = sbr.rel (%p1258) target = $region116
        $region115: #{segmenter_forward.4} parent=107 // pred_region
          %s1261 = sand.u32 %s456, 1
          %s1262 = scalar_lea.sflag [#allocation3], %s1261
          %s1263 = sand.u32 %s456, 1
          %s1264 = scalar_lea.vmem [#allocation2], %s1263
          %1266 = dma.done %s1262, 16
        $region116: #{segmenter_forward.4} parent=107 // pred_fallthru
          _
        // Predicated region
        $region117: #{segmenter_forward.4} parent=107 // pred_check
          %p1267 = pneg %p497
        $region118: #{segmenter_forward.4} parent=107 // pred_check_branch
          %1269 = sbr.rel (%p1267) target = $region120
        $region119: #{segmenter_forward.4} parent=107 // pred_region
          %s1270 = sand.u32 %s482, 1
          %s1271 = scalar_lea.sflag [#allocation5], %s1270
          %s1272 = sand.u32 %s482, 1
          %s1273 = scalar_lea.vmem [#allocation4], %s1272
          %1275 = dma.done %s1271, 16
        $region120: #{segmenter_forward.4} parent=107 // pred_fallthru
          _
      $region108: #{segmenter_forward.4} parent=5 // pred_fallthru
        _
    $region6: #{segmenter_forward.4} parent=1 // loop_footer
      %s37 = sadd.s32 1, %s33
    $region7: #{segmenter_forward.4} parent=1 // loop_footer_branch
      %32 = sbr.rel target = $region3
    $region8: #{segmenter_forward.4} parent=1 // loop_exit
      _
    %1276 = vsyncpa [#allocation3], 1
    %s1277 = scalar_lea.sflag [#allocation3], 1
    %1278 = vsyncpa %s1277, 1
    %1279 = vsyncpa [#allocation5], 1
    %s1280 = scalar_lea.sflag [#allocation5], 1
    %1281 = vsyncpa %s1280, 1

</llo_original>
